<compile_context>
chip_gen: v7x
topology: tpu7x:2x2x1
jax: 0.10.0
libtpu: 0.0.40
codegen_flags: <defaults>
</compile_context>

<pallas_src>
import jax
import jax.numpy as jnp
from jax.experimental import pallas as pl
from jax.experimental.pallas import tpu as pltpu

LANE = 128      # feature-dim padding target (use 256 for big, compute-bound layers on v6e/v7x)
SUBLANE = 16    # bf16 row packing (16 rows per packed vreg sublane group)


def _round_up(a, b):
    return (a + b - 1) // b * b


def dense_linear_kernel(x_ref, w0_ref, b0_ref, w1_ref, b1_ref,
                        w2a_ref, w2b_ref, b2_ref, out_ref):
    # x streams in its original dtype; cast to the MXU dtype in-register.
    x = x_ref[...].astype(w0_ref.dtype)

    # layer 0: Linear + ReLU   (bf16 matmul, f32 accumulate / bias / activation)
    h0 = jnp.dot(x, w0_ref[...], preferred_element_type=jnp.float32) + b0_ref[...]
    h0 = jnp.maximum(h0, 0.0)
    h0c = h0.astype(w1_ref.dtype)

    # layer 1: Linear + ReLU
    h1 = jnp.dot(h0c, w1_ref[...], preferred_element_type=jnp.float32) + b1_ref[...]
    h1 = jnp.maximum(h1, 0.0)
    h1c = h1.astype(w2b_ref.dtype)

    # layer 2 on concat([h0, h1]): two accumulating dots into one f32 accumulator.
    # Identical MXU work to the fused K=(H0p+H1p) matmul, zero concat copy.
    acc = jnp.dot(h0c, w2a_ref[...], preferred_element_type=jnp.float32)
    acc = acc + jnp.dot(h1c, w2b_ref[...], preferred_element_type=jnp.float32)
    out_ref[...] = (acc + b2_ref[...]).astype(out_ref.dtype)


def _vmem_estimate(tm, din_l, h0p, h1p, h2p, x_bytes, out_bytes, w_bytes, w_bufs):
    """Approximate per-step VMEM footprint (bytes)."""
    x_stream = 2 * tm * din_l * x_bytes                    # double-buffered x tiles
    out_stream = 2 * tm * h2p * out_bytes                  # double-buffered out tiles
    weights = w_bufs * w_bytes * (din_l * h0p + h0p * h1p + h0p * h2p + h1p * h2p)
    biases = w_bufs * 4 * (h0p + h1p + h2p)
    inter = tm * (6 * h0p + 6 * h1p + 4 * h2p)             # h0/h0c, h1/h1c, f32 acc
    return x_stream + out_stream + weights + biases + inter


def dense_linear_forward(x, params, *, tm=1024, compute_dtype=jnp.bfloat16,
                         out_dtype=None, vmem_budget_bytes=40 * 2**20):
    """params = [(W0, b0), (W1, b1), (W2, b2)] with PyTorch Linear layout (out, in)."""
    (W0, b0), (W1, b1), (W2, b2) = params
    N, in_dim = x.shape
    H0, H1, H2 = W0.shape[0], W1.shape[0], W2.shape[0]
    assert W0.shape[1] == in_dim and W1.shape[1] == H0 and W2.shape[1] == H0 + H1

    out_dtype = x.dtype if out_dtype is None else out_dtype
    H0p, H1p, H2p = (_round_up(h, LANE) for h in (H0, H1, H2))
    din_l = _round_up(in_dim, LANE)                     # VMEM lane footprint of an x tile

    x_bytes = jnp.dtype(x.dtype).itemsize
    out_bytes = jnp.dtype(out_dtype).itemsize
    w_bytes = jnp.dtype(compute_dtype).itemsize

    # ---- choose the row tile --------------------------------------------------
    tm_eff = _round_up(max(SUBLANE, min(tm, max(N, SUBLANE))), SUBLANE)
    # >=4 grid steps when N allows: shards the "parallel" axis across both v7x
    # TensorCores and keeps their pipelines warm.
    tm_eff = min(tm_eff, max(SUBLANE, _round_up(pl.cdiv(N, 4), SUBLANE)))
    # Shrink until the per-step footprint fits the budget (safe on v7x 64 MiB).
    while tm_eff > SUBLANE and _vmem_estimate(
            tm_eff, din_l, H0p, H1p, H2p, x_bytes, out_bytes, w_bytes, 1
    ) > vmem_budget_bytes:
        tm_eff = max(SUBLANE, _round_up(tm_eff // 2, SUBLANE))

    # vmem limit from the real estimate (assume double-buffered weights as the
    # conservative case), clamped to stay under v7x physical VMEM.
    est = _vmem_estimate(tm_eff, din_l, H0p, H1p, H2p, x_bytes, out_bytes, w_bytes, 2)
    vmem_limit = int(min(max(1.5 * est, 32 * 2**20), 64 * 2**20))

    # ---- weight/bias padding (one-time, N-independent) -------------------------
    def pad_wt(w, rows, cols):                           # w is (out, in) -> (rows, cols)
        wt = w.T.astype(compute_dtype)
        return jnp.zeros((rows, cols), compute_dtype).at[:wt.shape[0], :wt.shape[1]].set(wt)

    W0t = pad_wt(W0, in_dim, H0p)                        # (in_dim, H0p)
    W1t = pad_wt(W1, H0p, H1p)                           # (H0p,   H1p)
    W2a = pad_wt(W2[:, :H0], H0p, H2p)                   # (H0p,   H2p)  multiplies h0
    W2b = pad_wt(W2[:, H0:], H1p, H2p)                   # (H1p,   H2p)  multiplies h1

    def pad_bias(b, cols):
        return jnp.zeros((1, cols), jnp.float32).at[0, :b.shape[0]].set(b.astype(jnp.float32))

    b0r, b1r, b2r = pad_bias(b0, H0p), pad_bias(b1, H1p), pad_bias(b2, H2p)

    def run(buffered):
        def resident(shape):
            # Constant index_map => fetched once; single-buffer to halve its VMEM.
            if buffered:
                return pl.BlockSpec(shape, lambda i: (0, 0), pipeline_mode=pl.Buffered(1))
            return pl.BlockSpec(shape, lambda i: (0, 0))

        return pl.pallas_call(
            dense_linear_kernel,
            out_shape=jax.ShapeDtypeStruct((N, H2p), out_dtype),
            grid_spec=pltpu.PrefetchScalarGridSpec(
                num_scalar_prefetch=0,
                grid=(pl.cdiv(N, tm_eff),),
                in_specs=[
                    # x streams unpadded: block last dim == full in_dim (legal even < 128).
                    pl.BlockSpec((tm_eff, in_dim), lambda i: (i, 0)),
                    resident((in_dim, H0p)),     # W0t  (VMEM-resident)
                    resident((1, H0p)),          # b0
                    resident((H0p, H1p)),        # W1t
                    resident((1, H1p)),          # b1
                    resident((H0p, H2p)),        # W2a
                    resident((H1p, H2p)),        # W2b
                    resident((1, H2p)),          # b2
                ],
                out_specs=pl.BlockSpec((tm_eff, H2p), lambda i: (i, 0)),
            ),
            compiler_params=pltpu.CompilerParams(
                dimension_semantics=("parallel",),     # independent row tiles
                vmem_limit_bytes=vmem_limit,
            ),
        )(x, W0t, b0r, W1t, b1r, W2a, W2b, b2r)

    try:
        out_p = run(buffered=True)
    except Exception:
        # pipeline_mode / Buffered unsupported by this JAX build -> default buffering.
        out_p = run(buffered=False)

    return out_p[:, :H2]


def reference_forward(x, params):
    (W0, b0), (W1, b1), (W2, b2) = params
    h0 = jnp.maximum(x @ W0.T + b0, 0.0)
    h1 = jnp.maximum(h0 @ W1.T + b1, 0.0)
    cat = jnp.concatenate([h0, h1], axis=-1)
    return cat @ W2.T + b2


if __name__ == "__main__":
    # DenseLinear(in_dim=16, hidden_dim=[32, 32, 16]) with default flags.
    N, in_dim = 200, 16            # N not a tile multiple -> exercises the ragged last block
    hidden = [32, 32, 16]

    key = jax.random.PRNGKey(0)
    keys = jax.random.split(key, 8)

    # deterministic PyTorch-style uniform(-1/sqrt(fan_in), 1/sqrt(fan_in)) init
    def init_linear(kw, kb, fan_in, fan_out):
        bound = 1.0 / jnp.sqrt(fan_in)
        W = jax.random.uniform(kw, (fan_out, fan_in), jnp.float32, -bound, bound)
        b = jax.random.uniform(kb, (fan_out,), jnp.float32, -bound, bound)
        return W, b

    H0, H1, H2 = hidden
    params = [
        init_linear(keys[0], keys[1], in_dim, H0),     # Linear(16 -> 32)
        init_linear(keys[2], keys[3], H0, H1),         # Linear(32 -> 32)
        init_linear(keys[4], keys[5], H0 + H1, H2),    # Linear(64 -> 16) on concat
    ]

    x = jax.random.normal(keys[6], (N, in_dim), jnp.float32)

    # Default tm=1024: the wrapper auto-derives tm_eff=64 here (>=4 grid steps),
    # so the grid has several steps and a ragged tail.
    out = dense_linear_forward(x, params)
    out = jax.block_until_ready(out)

    ref = reference_forward(x, params)
    assert out.shape == (N, H2)
    assert out.dtype == x.dtype
    # bf16 matmuls with f32 accumulation vs. pure-f32 reference -> loosened tolerance.
    assert jnp.allclose(out, ref, atol=5e-2, rtol=5e-2), "mismatch vs reference"

    print("KERNEL_OK")
</pallas_src>

<mosaic_0001>
module attributes {stable_mosaic.version = 11 : i64} {
  func.func @dense_linear_kernel(%arg0: i32, %arg1: memref<64x16xf32, #tpu.memory_space<vmem>>, %arg2: memref<16x128xbf16, #tpu.memory_space<vmem>>, %arg3: memref<1x128xf32, #tpu.memory_space<vmem>>, %arg4: memref<128x128xbf16, #tpu.memory_space<vmem>>, %arg5: memref<1x128xf32, #tpu.memory_space<vmem>>, %arg6: memref<128x128xbf16, #tpu.memory_space<vmem>>, %arg7: memref<128x128xbf16, #tpu.memory_space<vmem>>, %arg8: memref<1x128xf32, #tpu.memory_space<vmem>>, %arg9: memref<64x128xf32, #tpu.memory_space<vmem>>) attributes {dimension_semantics = [#tpu.dimension_semantics<parallel>], iteration_bounds = array<i64: 4>, scalar_prefetch = 0 : i64, scratch_operands = 0 : i64, tpu.core_type = #tpu.core_type<tc>, window_params = [{transform_indices = @transform_0, window_bounds = array<i64: 64, 16>}, {pipeline_mode = #tpu.pipeline_mode<synchronous>, transform_indices = @transform_1, window_bounds = array<i64: 16, 128>}, {pipeline_mode = #tpu.pipeline_mode<synchronous>, transform_indices = @transform_2, window_bounds = array<i64: 1, 128>}, {pipeline_mode = #tpu.pipeline_mode<synchronous>, transform_indices = @transform_3, window_bounds = array<i64: 128, 128>}, {pipeline_mode = #tpu.pipeline_mode<synchronous>, transform_indices = @transform_4, window_bounds = array<i64: 1, 128>}, {pipeline_mode = #tpu.pipeline_mode<synchronous>, transform_indices = @transform_5, window_bounds = array<i64: 128, 128>}, {pipeline_mode = #tpu.pipeline_mode<synchronous>, transform_indices = @transform_6, window_bounds = array<i64: 128, 128>}, {pipeline_mode = #tpu.pipeline_mode<synchronous>, transform_indices = @transform_7, window_bounds = array<i64: 1, 128>}, {transform_indices = @transform_8, window_bounds = array<i64: 64, 128>}]} {
    %c0 = arith.constant 0 : index
    %c0_0 = arith.constant 0 : index
    %0 = vector.load %arg1[%c0, %c0_0] : memref<64x16xf32, #tpu.memory_space<vmem>>, vector<64x16xf32>
    %1 = arith.truncf %0 : vector<64x16xf32> to vector<64x16xbf16>
    %c0_1 = arith.constant 0 : index
    %c0_2 = arith.constant 0 : index
    %2 = vector.load %arg2[%c0_1, %c0_2] : memref<16x128xbf16, #tpu.memory_space<vmem>>, vector<16x128xbf16>
    %cst = arith.constant dense<0.000000e+00> : vector<64x128xf32>
    %3 = tpu.matmul %1, %2, %cst {dimension_numbers = #tpu.dot_dimension_numbers<[1], [0], [0], [1], [0, 0, 1, 1], [], []>} : vector<64x16xbf16>, vector<16x128xbf16>, vector<64x128xf32> -> vector<64x128xf32>
    %c0_3 = arith.constant 0 : index
    %c0_4 = arith.constant 0 : index
    %4 = vector.load %arg3[%c0_3, %c0_4] : memref<1x128xf32, #tpu.memory_space<vmem>>, vector<1x128xf32>
    %5 = vector.broadcast %4 : vector<1x128xf32> to vector<64x128xf32>
    %6 = arith.addf %3, %5 : vector<64x128xf32>
    %cst_5 = arith.constant 0.000000e+00 : f32
    %7 = vector.broadcast %cst_5 : f32 to vector<64x128xf32>
    %8 = arith.maximumf %6, %7 : vector<64x128xf32>
    %9 = arith.truncf %8 : vector<64x128xf32> to vector<64x128xbf16>
    %c0_6 = arith.constant 0 : index
    %c0_7 = arith.constant 0 : index
    %10 = vector.load %arg4[%c0_6, %c0_7] : memref<128x128xbf16, #tpu.memory_space<vmem>>, vector<128x128xbf16>
    %cst_8 = arith.constant dense<0.000000e+00> : vector<64x128xf32>
    %11 = tpu.matmul %9, %10, %cst_8 {dimension_numbers = #tpu.dot_dimension_numbers<[1], [0], [0], [1], [0, 0, 1, 1], [], []>} : vector<64x128xbf16>, vector<128x128xbf16>, vector<64x128xf32> -> vector<64x128xf32>
    %c0_9 = arith.constant 0 : index
    %c0_10 = arith.constant 0 : index
    %12 = vector.load %arg5[%c0_9, %c0_10] : memref<1x128xf32, #tpu.memory_space<vmem>>, vector<1x128xf32>
    %13 = vector.broadcast %12 : vector<1x128xf32> to vector<64x128xf32>
    %14 = arith.addf %11, %13 : vector<64x128xf32>
    %cst_11 = arith.constant 0.000000e+00 : f32
    %15 = vector.broadcast %cst_11 : f32 to vector<64x128xf32>
    %16 = arith.maximumf %14, %15 : vector<64x128xf32>
    %17 = arith.truncf %16 : vector<64x128xf32> to vector<64x128xbf16>
    %c0_12 = arith.constant 0 : index
    %c0_13 = arith.constant 0 : index
    %18 = vector.load %arg6[%c0_12, %c0_13] : memref<128x128xbf16, #tpu.memory_space<vmem>>, vector<128x128xbf16>
    %cst_14 = arith.constant dense<0.000000e+00> : vector<64x128xf32>
    %19 = tpu.matmul %9, %18, %cst_14 {dimension_numbers = #tpu.dot_dimension_numbers<[1], [0], [0], [1], [0, 0, 1, 1], [], []>} : vector<64x128xbf16>, vector<128x128xbf16>, vector<64x128xf32> -> vector<64x128xf32>
    %c0_15 = arith.constant 0 : index
    %c0_16 = arith.constant 0 : index
    %20 = vector.load %arg7[%c0_15, %c0_16] : memref<128x128xbf16, #tpu.memory_space<vmem>>, vector<128x128xbf16>
    %cst_17 = arith.constant dense<0.000000e+00> : vector<64x128xf32>
    %21 = tpu.matmul %17, %20, %cst_17 {dimension_numbers = #tpu.dot_dimension_numbers<[1], [0], [0], [1], [0, 0, 1, 1], [], []>} : vector<64x128xbf16>, vector<128x128xbf16>, vector<64x128xf32> -> vector<64x128xf32>
    %22 = arith.addf %19, %21 : vector<64x128xf32>
    %c0_18 = arith.constant 0 : index
    %c0_19 = arith.constant 0 : index
    %23 = vector.load %arg8[%c0_18, %c0_19] : memref<1x128xf32, #tpu.memory_space<vmem>>, vector<1x128xf32>
    %24 = vector.broadcast %23 : vector<1x128xf32> to vector<64x128xf32>
    %25 = arith.addf %22, %24 : vector<64x128xf32>
    %c0_20 = arith.constant 0 : index
    %c0_21 = arith.constant 0 : index
    %26 = vector.load %arg9[%c0_20, %c0_21] : memref<64x128xf32, #tpu.memory_space<vmem>>, vector<64x128xf32>
    tpu.vector_store %arg9[%c0_20, %c0_21], %25 {strides = array<i32>} : memref<64x128xf32, #tpu.memory_space<vmem>>, vector<64x128xf32>,
    return
  }
  func.func @transform_0(%arg0: i32) -> (i32, i32) {
    %c0_i32 = arith.constant 0 : i32
    %c0_i32_0 = arith.constant 0 : i32
    return %arg0, %c0_i32 : i32, i32
  }
  func.func @transform_1(%arg0: i32) -> (i32, i32) {
    %c0_i32 = arith.constant 0 : i32
    %c0_i32_0 = arith.constant 0 : i32
    %c0_i32_1 = arith.constant 0 : i32
    return %c0_i32, %c0_i32_0 : i32, i32
  }
  func.func @transform_2(%arg0: i32) -> (i32, i32) {
    %c0_i32 = arith.constant 0 : i32
    %c0_i32_0 = arith.constant 0 : i32
    %c0_i32_1 = arith.constant 0 : i32
    return %c0_i32, %c0_i32_0 : i32, i32
  }
  func.func @transform_3(%arg0: i32) -> (i32, i32) {
    %c0_i32 = arith.constant 0 : i32
    %c0_i32_0 = arith.constant 0 : i32
    %c0_i32_1 = arith.constant 0 : i32
    return %c0_i32, %c0_i32_0 : i32, i32
  }
  func.func @transform_4(%arg0: i32) -> (i32, i32) {
    %c0_i32 = arith.constant 0 : i32
    %c0_i32_0 = arith.constant 0 : i32
    %c0_i32_1 = arith.constant 0 : i32
    return %c0_i32, %c0_i32_0 : i32, i32
  }
  func.func @transform_5(%arg0: i32) -> (i32, i32) {
    %c0_i32 = arith.constant 0 : i32
    %c0_i32_0 = arith.constant 0 : i32
    %c0_i32_1 = arith.constant 0 : i32
    return %c0_i32, %c0_i32_0 : i32, i32
  }
  func.func @transform_6(%arg0: i32) -> (i32, i32) {
    %c0_i32 = arith.constant 0 : i32
    %c0_i32_0 = arith.constant 0 : i32
    %c0_i32_1 = arith.constant 0 : i32
    return %c0_i32, %c0_i32_0 : i32, i32
  }
  func.func @transform_7(%arg0: i32) -> (i32, i32) {
    %c0_i32 = arith.constant 0 : i32
    %c0_i32_0 = arith.constant 0 : i32
    %c0_i32_1 = arith.constant 0 : i32
    return %c0_i32, %c0_i32_0 : i32, i32
  }
  func.func @transform_8(%arg0: i32) -> (i32, i32) {
    %c0_i32 = arith.constant 0 : i32
    %c0_i32_0 = arith.constant 0 : i32
    return %arg0, %c0_i32 : i32, i32
  }
}

module attributes {stable_mosaic.version = 11 : i64} {
  func.func @dense_linear_kernel(%arg0: i32, %arg1: memref<64x16xf32, #tpu.memory_space<vmem>>, %arg2: memref<16x128xbf16, #tpu.memory_space<vmem>>, %arg3: memref<1x128xf32, #tpu.memory_space<vmem>>, %arg4: memref<128x128xbf16, #tpu.memory_space<vmem>>, %arg5: memref<1x128xf32, #tpu.memory_space<vmem>>, %arg6: memref<128x128xbf16, #tpu.memory_space<vmem>>, %arg7: memref<128x128xbf16, #tpu.memory_space<vmem>>, %arg8: memref<1x128xf32, #tpu.memory_space<vmem>>, %arg9: memref<64x128xf32, #tpu.memory_space<vmem>>) attributes {dimension_semantics = [#tpu.dimension_semantics<parallel>], iteration_bounds = array<i64: 4>, scalar_prefetch = 0 : i64, scratch_operands = 0 : i64, tpu.core_type = #tpu.core_type<tc>, window_params = [{transform_indices = @transform_0, window_bounds = array<i64: 64, 16>}, {pipeline_mode = #tpu.pipeline_mode<synchronous>, transform_indices = @transform_1, window_bounds = array<i64: 16, 128>}, {pipeline_mode = #tpu.pipeline_mode<synchronous>, transform_indices = @transform_2, window_bounds = array<i64: 1, 128>}, {pipeline_mode = #tpu.pipeline_mode<synchronous>, transform_indices = @transform_3, window_bounds = array<i64: 128, 128>}, {pipeline_mode = #tpu.pipeline_mode<synchronous>, transform_indices = @transform_4, window_bounds = array<i64: 1, 128>}, {pipeline_mode = #tpu.pipeline_mode<synchronous>, transform_indices = @transform_5, window_bounds = array<i64: 128, 128>}, {pipeline_mode = #tpu.pipeline_mode<synchronous>, transform_indices = @transform_6, window_bounds = array<i64: 128, 128>}, {pipeline_mode = #tpu.pipeline_mode<synchronous>, transform_indices = @transform_7, window_bounds = array<i64: 1, 128>}, {transform_indices = @transform_8, window_bounds = array<i64: 64, 128>}]} {
    %c0 = arith.constant 0 : index
    %c0_0 = arith.constant 0 : index
    %0 = vector.load %arg1[%c0, %c0_0] : memref<64x16xf32, #tpu.memory_space<vmem>>, vector<64x16xf32>
    %1 = arith.truncf %0 : vector<64x16xf32> to vector<64x16xbf16>
    %c0_1 = arith.constant 0 : index
    %c0_2 = arith.constant 0 : index
    %2 = vector.load %arg2[%c0_1, %c0_2] : memref<16x128xbf16, #tpu.memory_space<vmem>>, vector<16x128xbf16>
    %cst = arith.constant dense<0.000000e+00> : vector<64x128xf32>
    %3 = tpu.matmul %1, %2, %cst {dimension_numbers = #tpu.dot_dimension_numbers<[1], [0], [0], [1], [0, 0, 1, 1], [], []>} : vector<64x16xbf16>, vector<16x128xbf16>, vector<64x128xf32> -> vector<64x128xf32>
    %c0_3 = arith.constant 0 : index
    %c0_4 = arith.constant 0 : index
    %4 = vector.load %arg3[%c0_3, %c0_4] : memref<1x128xf32, #tpu.memory_space<vmem>>, vector<1x128xf32>
    %5 = vector.broadcast %4 : vector<1x128xf32> to vector<64x128xf32>
    %6 = arith.addf %3, %5 : vector<64x128xf32>
    %cst_5 = arith.constant 0.000000e+00 : f32
    %7 = vector.broadcast %cst_5 : f32 to vector<64x128xf32>
    %8 = arith.maximumf %6, %7 : vector<64x128xf32>
    %9 = arith.truncf %8 : vector<64x128xf32> to vector<64x128xbf16>
    %c0_6 = arith.constant 0 : index
    %c0_7 = arith.constant 0 : index
    %10 = vector.load %arg4[%c0_6, %c0_7] : memref<128x128xbf16, #tpu.memory_space<vmem>>, vector<128x128xbf16>
    %cst_8 = arith.constant dense<0.000000e+00> : vector<64x128xf32>
    %11 = tpu.matmul %9, %10, %cst_8 {dimension_numbers = #tpu.dot_dimension_numbers<[1], [0], [0], [1], [0, 0, 1, 1], [], []>} : vector<64x128xbf16>, vector<128x128xbf16>, vector<64x128xf32> -> vector<64x128xf32>
    %c0_9 = arith.constant 0 : index
    %c0_10 = arith.constant 0 : index
    %12 = vector.load %arg5[%c0_9, %c0_10] : memref<1x128xf32, #tpu.memory_space<vmem>>, vector<1x128xf32>
    %13 = vector.broadcast %12 : vector<1x128xf32> to vector<64x128xf32>
    %14 = arith.addf %11, %13 : vector<64x128xf32>
    %cst_11 = arith.constant 0.000000e+00 : f32
    %15 = vector.broadcast %cst_11 : f32 to vector<64x128xf32>
    %16 = arith.maximumf %14, %15 : vector<64x128xf32>
    %17 = arith.truncf %16 : vector<64x128xf32> to vector<64x128xbf16>
    %c0_12 = arith.constant 0 : index
    %c0_13 = arith.constant 0 : index
    %18 = vector.load %arg6[%c0_12, %c0_13] : memref<128x128xbf16, #tpu.memory_space<vmem>>, vector<128x128xbf16>
    %cst_14 = arith.constant dense<0.000000e+00> : vector<64x128xf32>
    %19 = tpu.matmul %9, %18, %cst_14 {dimension_numbers = #tpu.dot_dimension_numbers<[1], [0], [0], [1], [0, 0, 1, 1], [], []>} : vector<64x128xbf16>, vector<128x128xbf16>, vector<64x128xf32> -> vector<64x128xf32>
    %c0_15 = arith.constant 0 : index
    %c0_16 = arith.constant 0 : index
    %20 = vector.load %arg7[%c0_15, %c0_16] : memref<128x128xbf16, #tpu.memory_space<vmem>>, vector<128x128xbf16>
    %cst_17 = arith.constant dense<0.000000e+00> : vector<64x128xf32>
    %21 = tpu.matmul %17, %20, %cst_17 {dimension_numbers = #tpu.dot_dimension_numbers<[1], [0], [0], [1], [0, 0, 1, 1], [], []>} : vector<64x128xbf16>, vector<128x128xbf16>, vector<64x128xf32> -> vector<64x128xf32>
    %22 = arith.addf %19, %21 : vector<64x128xf32>
    %c0_18 = arith.constant 0 : index
    %c0_19 = arith.constant 0 : index
    %23 = vector.load %arg8[%c0_18, %c0_19] : memref<1x128xf32, #tpu.memory_space<vmem>>, vector<1x128xf32>
    %24 = vector.broadcast %23 : vector<1x128xf32> to vector<64x128xf32>
    %25 = arith.addf %22, %24 : vector<64x128xf32>
    %c0_20 = arith.constant 0 : index
    %c0_21 = arith.constant 0 : index
    %26 = vector.load %arg9[%c0_20, %c0_21] : memref<64x128xf32, #tpu.memory_space<vmem>>, vector<64x128xf32>
    tpu.vector_store %arg9[%c0_20, %c0_21], %25 {strides = array<i32>} : memref<64x128xf32, #tpu.memory_space<vmem>>, vector<64x128xf32>,
    return
  }
  func.func @transform_0(%arg0: i32) -> (i32, i32) {
    %c0_i32 = arith.constant 0 : i32
    %c0_i32_0 = arith.constant 0 : i32
    return %arg0, %c0_i32 : i32, i32
  }
  func.func @transform_1(%arg0: i32) -> (i32, i32) {
    %c0_i32 = arith.constant 0 : i32
    %c0_i32_0 = arith.constant 0 : i32
    %c0_i32_1 = arith.constant 0 : i32
    return %c0_i32, %c0_i32_0 : i32, i32
  }
  func.func @transform_2(%arg0: i32) -> (i32, i32) {
    %c0_i32 = arith.constant 0 : i32
    %c0_i32_0 = arith.constant 0 : i32
    %c0_i32_1 = arith.constant 0 : i32
    return %c0_i32, %c0_i32_0 : i32, i32
  }
  func.func @transform_3(%arg0: i32) -> (i32, i32) {
    %c0_i32 = arith.constant 0 : i32
    %c0_i32_0 = arith.constant 0 : i32
    %c0_i32_1 = arith.constant 0 : i32
    return %c0_i32, %c0_i32_0 : i32, i32
  }
  func.func @transform_4(%arg0: i32) -> (i32, i32) {
    %c0_i32 = arith.constant 0 : i32
    %c0_i32_0 = arith.constant 0 : i32
    %c0_i32_1 = arith.constant 0 : i32
    return %c0_i32, %c0_i32_0 : i32, i32
  }
  func.func @transform_5(%arg0: i32) -> (i32, i32) {
    %c0_i32 = arith.constant 0 : i32
    %c0_i32_0 = arith.constant 0 : i32
    %c0_i32_1 = arith.constant 0 : i32
    return %c0_i32, %c0_i32_0 : i32, i32
  }
  func.func @transform_6(%arg0: i32) -> (i32, i32) {
    %c0_i32 = arith.constant 0 : i32
    %c0_i32_0 = arith.constant 0 : i32
    %c0_i32_1 = arith.constant 0 : i32
    return %c0_i32, %c0_i32_0 : i32, i32
  }
  func.func @transform_7(%arg0: i32) -> (i32, i32) {
    %c0_i32 = arith.constant 0 : i32
    %c0_i32_0 = arith.constant 0 : i32
    %c0_i32_1 = arith.constant 0 : i32
    return %c0_i32, %c0_i32_0 : i32, i32
  }
  func.func @transform_8(%arg0: i32) -> (i32, i32) {
    %c0_i32 = arith.constant 0 : i32
    %c0_i32_0 = arith.constant 0 : i32
    return %arg0, %c0_i32 : i32, i32
  }
}

</mosaic_0001>

<llo_original>
// kernel: tpu_custom_call.1
$region0: #{tpu_custom_call.1}
  #allocation0 [shape = 'u32[]', space=smem, size = 0x4, offset = 0x4, fixed_abs, tag = 'smem constant byte address 0x4 - core index']
  #allocation1 [shape = 'u32[144,128]{1,0:T(1,128)}', space=vmem, size = 0x12000, scoped, tag = 'internal scratch']
  %s0 = inlined_call_operand.vmem [shape: f32[200,16], index: 0, kind: input, shape index: {}]
  %s1 = inlined_call_operand.vmem [shape: bf16[16,128], index: 1, kind: input, shape index: {}]
  %s2 = inlined_call_operand.vmem [shape: f32[1,128], index: 2, kind: input, shape index: {}]
  %s3 = inlined_call_operand.vmem [shape: bf16[128,128], index: 3, kind: input, shape index: {}]
  %s4 = inlined_call_operand.vmem [shape: f32[1,128], index: 4, kind: input, shape index: {}]
  %s5 = inlined_call_operand.vmem [shape: bf16[128,128], index: 5, kind: input, shape index: {}]
  %s6 = inlined_call_operand.vmem [shape: bf16[128,128], index: 6, kind: input, shape index: {}]
  %s7 = inlined_call_operand.vmem [shape: f32[1,128], index: 7, kind: input, shape index: {}]
  %s8 = inlined_call_operand.hbm [shape: f32[200,128], index: 8, kind: output, shape index: {}]
  %s9 = sld [smem:[#allocation0]]
  $region65: #{tpu_custom_call.1} parent=0
    _
  %s11 = ssub.s32 1, %s9
  %s12 = scalar_select 0, %s11, %s9
  $region1: #{tpu_custom_call.1} parent=0
    #allocation2 [shape = 'u8[65536]{0}', space=vmem, size = 0x10000, scoped, tag = 'output window, operand 0']
    #allocation3 [shape = 's32[2]{0}', space=sflag, size = 0x8, scoped, tag = 'scoped memory for tpu_custom_call.1']
    %13 = vsyncpa [#allocation3], 0
    %s14 = scalar_lea.sflag [#allocation3], 1
    %15 = vsyncpa %s14, 0
    loop: start=0, step=1, limit=6
    $region2: #{tpu_custom_call.1} parent=1 // loop_pre_header
      _
    $region3: #{tpu_custom_call.1} parent=1 // loop_header
      %s17 = sphi 0, %s21
      %p18 = scmp.ge.s32.totalorder %s17, 6
      %s27 = sphi 0, %s29
      %s30 = sphi 0, %s27
      %s31 = sphi 0, %s30
      %s47 = sphi 0, %s31
      %s51 = sphi 0, %s51
      %s53 = sphi 0, %s51
      %s54 = sphi 0, %s53
      %s68 = sphi 0, %s54
      %s72 = sphi 0, %s72
      %s74 = sphi 0, %s72
      %s75 = sphi 0, %s74
      %s89 = sphi 0, %s75
      %s93 = sphi 0, %s93
      %s95 = sphi 0, %s93
      %s96 = sphi 0, %s95
      %s110 = sphi 0, %s96
      %s114 = sphi 0, %s114
      %s116 = sphi 0, %s114
      %s117 = sphi 0, %s116
      %s131 = sphi 0, %s117
      %s135 = sphi 0, %s135
      %s137 = sphi 0, %s135
      %s138 = sphi 0, %s137
      %s152 = sphi 0, %s138
      %s156 = sphi 0, %s156
      %s158 = sphi 0, %s156
      %s159 = sphi 0, %s158
      %s173 = sphi 0, %s159
      %s177 = sphi 0, %s177
      %s179 = sphi 0, %s177
      %s180 = sphi 0, %s179
      %s194 = sphi 0, %s180
      %s200 = sphi 0, %s202
      %s203 = sphi 0, %s200
      %s204 = sphi 0, %s203
      %s220 = sphi 0, %s204
    $region4: #{tpu_custom_call.1} parent=1 // loop_header_branch
      %20 = sbr.rel (%p18) target = $region8
    $region5: #{tpu_custom_call.1} parent=1 // loop_body
      %s22 = ssub.s32 %s17, 1
      %s23 = ssub.s32 %s17, 2
      %s24 = sadd.s32 %s17, 1
      %s25 = ssub.s32 %s17, %s24
      %p26 = scmp.eq.s32.totalorder %s25, 0
      %s28 = sadd.s32 %s27, 1
      %s29 = scalar_select %p26, %s27, %s28
      %p32 = pneg %p26
      %p33 = scmp.eq.s32.totalorder %s17, 3
      %p34 = por %p32, %p33
      %p35 = scmp.ne.s32.totalorder %s27, %s30
      %p36 = scmp.eq.s32.totalorder %s17, 0
      %p37 = por %p35, %p36
      %p38 = scmp.ne.s32.totalorder %s27, %s30
      %p39 = scmp.eq.s32.totalorder %s22, 3
      %p40 = por %p38, %p39
      %p41 = scmp.ne.s32.totalorder %s30, %s31
      %p42 = scmp.eq.s32.totalorder %s22, 0
      %p43 = por %p41, %p42
      %p44 = scmp.ne.s32.totalorder %s30, %s31
      %p45 = scmp.eq.s32.totalorder %s23, 3
      %p46 = por %p44, %p45
      %p48 = scmp.ne.s32.totalorder %s31, %s47
      %p49 = scmp.eq.s32.totalorder %s23, 0
      %p50 = por %p48, %p49
      %s52 = sadd.s32 %s51, 1
      %p55 = scmp.eq.s32.totalorder %s17, 3
      %p56 = scmp.ne.s32.totalorder %s51, %s53
      %p57 = scmp.eq.s32.totalorder %s17, 0
      %p58 = por %p56, %p57
      %p59 = scmp.ne.s32.totalorder %s51, %s53
      %p60 = scmp.eq.s32.totalorder %s22, 3
      %p61 = por %p59, %p60
      %p62 = scmp.ne.s32.totalorder %s53, %s54
      %p63 = scmp.eq.s32.totalorder %s22, 0
      %p64 = por %p62, %p63
      %p65 = scmp.ne.s32.totalorder %s53, %s54
      %p66 = scmp.eq.s32.totalorder %s23, 3
      %p67 = por %p65, %p66
      %p69 = scmp.ne.s32.totalorder %s54, %s68
      %p70 = scmp.eq.s32.totalorder %s23, 0
      %p71 = por %p69, %p70
      %s73 = sadd.s32 %s72, 1
      %p76 = scmp.eq.s32.totalorder %s17, 3
      %p77 = scmp.ne.s32.totalorder %s72, %s74
      %p78 = scmp.eq.s32.totalorder %s17, 0
      %p79 = por %p77, %p78
      %p80 = scmp.ne.s32.totalorder %s72, %s74
      %p81 = scmp.eq.s32.totalorder %s22, 3
      %p82 = por %p80, %p81
      %p83 = scmp.ne.s32.totalorder %s74, %s75
      %p84 = scmp.eq.s32.totalorder %s22, 0
      %p85 = por %p83, %p84
      %p86 = scmp.ne.s32.totalorder %s74, %s75
      %p87 = scmp.eq.s32.totalorder %s23, 3
      %p88 = por %p86, %p87
      %p90 = scmp.ne.s32.totalorder %s75, %s89
      %p91 = scmp.eq.s32.totalorder %s23, 0
      %p92 = por %p90, %p91
      %s94 = sadd.s32 %s93, 1
      %p97 = scmp.eq.s32.totalorder %s17, 3
      %p98 = scmp.ne.s32.totalorder %s93, %s95
      %p99 = scmp.eq.s32.totalorder %s17, 0
      %p100 = por %p98, %p99
      %p101 = scmp.ne.s32.totalorder %s93, %s95
      %p102 = scmp.eq.s32.totalorder %s22, 3
      %p103 = por %p101, %p102
      %p104 = scmp.ne.s32.totalorder %s95, %s96
      %p105 = scmp.eq.s32.totalorder %s22, 0
      %p106 = por %p104, %p105
      %p107 = scmp.ne.s32.totalorder %s95, %s96
      %p108 = scmp.eq.s32.totalorder %s23, 3
      %p109 = por %p107, %p108
      %p111 = scmp.ne.s32.totalorder %s96, %s110
      %p112 = scmp.eq.s32.totalorder %s23, 0
      %p113 = por %p111, %p112
      %s115 = sadd.s32 %s114, 1
      %p118 = scmp.eq.s32.totalorder %s17, 3
      %p119 = scmp.ne.s32.totalorder %s114, %s116
      %p120 = scmp.eq.s32.totalorder %s17, 0
      %p121 = por %p119, %p120
      %p122 = scmp.ne.s32.totalorder %s114, %s116
      %p123 = scmp.eq.s32.totalorder %s22, 3
      %p124 = por %p122, %p123
      %p125 = scmp.ne.s32.totalorder %s116, %s117
      %p126 = scmp.eq.s32.totalorder %s22, 0
      %p127 = por %p125, %p126
      %p128 = scmp.ne.s32.totalorder %s116, %s117
      %p129 = scmp.eq.s32.totalorder %s23, 3
      %p130 = por %p128, %p129
      %p132 = scmp.ne.s32.totalorder %s117, %s131
      %p133 = scmp.eq.s32.totalorder %s23, 0
      %p134 = por %p132, %p133
      %s136 = sadd.s32 %s135, 1
      %p139 = scmp.eq.s32.totalorder %s17, 3
      %p140 = scmp.ne.s32.totalorder %s135, %s137
      %p141 = scmp.eq.s32.totalorder %s17, 0
      %p142 = por %p140, %p141
      %p143 = scmp.ne.s32.totalorder %s135, %s137
      %p144 = scmp.eq.s32.totalorder %s22, 3
      %p145 = por %p143, %p144
      %p146 = scmp.ne.s32.totalorder %s137, %s138
      %p147 = scmp.eq.s32.totalorder %s22, 0
      %p148 = por %p146, %p147
      %p149 = scmp.ne.s32.totalorder %s137, %s138
      %p150 = scmp.eq.s32.totalorder %s23, 3
      %p151 = por %p149, %p150
      %p153 = scmp.ne.s32.totalorder %s138, %s152
      %p154 = scmp.eq.s32.totalorder %s23, 0
      %p155 = por %p153, %p154
      %s157 = sadd.s32 %s156, 1
      %p160 = scmp.eq.s32.totalorder %s17, 3
      %p161 = scmp.ne.s32.totalorder %s156, %s158
      %p162 = scmp.eq.s32.totalorder %s17, 0
      %p163 = por %p161, %p162
      %p164 = scmp.ne.s32.totalorder %s156, %s158
      %p165 = scmp.eq.s32.totalorder %s22, 3
      %p166 = por %p164, %p165
      %p167 = scmp.ne.s32.totalorder %s158, %s159
      %p168 = scmp.eq.s32.totalorder %s22, 0
      %p169 = por %p167, %p168
      %p170 = scmp.ne.s32.totalorder %s158, %s159
      %p171 = scmp.eq.s32.totalorder %s23, 3
      %p172 = por %p170, %p171
      %p174 = scmp.ne.s32.totalorder %s159, %s173
      %p175 = scmp.eq.s32.totalorder %s23, 0
      %p176 = por %p174, %p175
      %s178 = sadd.s32 %s177, 1
      %p181 = scmp.eq.s32.totalorder %s17, 3
      %p182 = scmp.ne.s32.totalorder %s177, %s179
      %p183 = scmp.eq.s32.totalorder %s17, 0
      %p184 = por %p182, %p183
      %p185 = scmp.ne.s32.totalorder %s177, %s179
      %p186 = scmp.eq.s32.totalorder %s22, 3
      %p187 = por %p185, %p186
      %p188 = scmp.ne.s32.totalorder %s179, %s180
      %p189 = scmp.eq.s32.totalorder %s22, 0
      %p190 = por %p188, %p189
      %p191 = scmp.ne.s32.totalorder %s179, %s180
      %p192 = scmp.eq.s32.totalorder %s23, 3
      %p193 = por %p191, %p192
      %p195 = scmp.ne.s32.totalorder %s180, %s194
      %p196 = scmp.eq.s32.totalorder %s23, 0
      %p197 = por %p195, %p196
      %s198 = ssub.s32 %s17, %s24
      %p199 = scmp.eq.s32.totalorder %s198, 0
      %s201 = sadd.s32 %s200, 1
      %s202 = scalar_select %p199, %s200, %s201
      %p205 = pneg %p199
      %p206 = scmp.eq.s32.totalorder %s17, 3
      %p207 = por %p205, %p206
      %p208 = scmp.ne.s32.totalorder %s200, %s203
      %p209 = scmp.eq.s32.totalorder %s17, 0
      %p210 = por %p208, %p209
      %p211 = scmp.ne.s32.totalorder %s200, %s203
      %p212 = scmp.eq.s32.totalorder %s22, 3
      %p213 = por %p211, %p212
      %p214 = scmp.ne.s32.totalorder %s203, %s204
      %p215 = scmp.eq.s32.totalorder %s22, 0
      %p216 = por %p214, %p215
      %p217 = scmp.ne.s32.totalorder %s203, %s204
      %p218 = scmp.eq.s32.totalorder %s23, 3
      %p219 = por %p217, %p218
      %p221 = scmp.ne.s32.totalorder %s204, %s220
      %p222 = scmp.eq.s32.totalorder %s23, 0
      %p223 = por %p221, %p222
      %p224 = scmp.le.s32.totalorder 1, %s17
      %p225 = scmp.lt.s32.totalorder %s17, 5
      %p226 = pnand %p224, %p225
      %p227 = pneg %p226
      // Predicated region
      $region9: #{tpu_custom_call.1} parent=5 // pred_check
        _
      $region10: #{tpu_custom_call.1} parent=5 // pred_check_branch
        %229 = sbr.rel (%p226) target = $region12
      $region11: #{tpu_custom_call.1} parent=5 // pred_region
        %s230 = ssub.s32 %s17, 1
        // Predicated region
        $region13: #{tpu_custom_call.1} parent=11 // pred_check
          %p231 = pneg %p64
        $region14: #{tpu_custom_call.1} parent=11 // pred_check_branch
          %233 = sbr.rel (%p231) target = $region16
        $region15: #{tpu_custom_call.1} parent=11 // pred_region
          _
        $region16: #{tpu_custom_call.1} parent=11 // pred_fallthru
          _
        // Predicated region
        $region17: #{tpu_custom_call.1} parent=11 // pred_check
          %p234 = pneg %p85
        $region18: #{tpu_custom_call.1} parent=11 // pred_check_branch
          %236 = sbr.rel (%p234) target = $region20
        $region19: #{tpu_custom_call.1} parent=11 // pred_region
          _
        $region20: #{tpu_custom_call.1} parent=11 // pred_fallthru
          _
        // Predicated region
        $region21: #{tpu_custom_call.1} parent=11 // pred_check
          %p237 = pneg %p106
        $region22: #{tpu_custom_call.1} parent=11 // pred_check_branch
          %239 = sbr.rel (%p237) target = $region24
        $region23: #{tpu_custom_call.1} parent=11 // pred_region
          _
        $region24: #{tpu_custom_call.1} parent=11 // pred_fallthru
          _
        // Predicated region
        $region25: #{tpu_custom_call.1} parent=11 // pred_check
          %p240 = pneg %p127
        $region26: #{tpu_custom_call.1} parent=11 // pred_check_branch
          %242 = sbr.rel (%p240) target = $region28
        $region27: #{tpu_custom_call.1} parent=11 // pred_region
          _
        $region28: #{tpu_custom_call.1} parent=11 // pred_fallthru
          _
        // Predicated region
        $region29: #{tpu_custom_call.1} parent=11 // pred_check
          %p243 = pneg %p148
        $region30: #{tpu_custom_call.1} parent=11 // pred_check_branch
          %245 = sbr.rel (%p243) target = $region32
        $region31: #{tpu_custom_call.1} parent=11 // pred_region
          _
        $region32: #{tpu_custom_call.1} parent=11 // pred_fallthru
          _
        // Predicated region
        $region33: #{tpu_custom_call.1} parent=11 // pred_check
          %p246 = pneg %p169
        $region34: #{tpu_custom_call.1} parent=11 // pred_check_branch
          %248 = sbr.rel (%p246) target = $region36
        $region35: #{tpu_custom_call.1} parent=11 // pred_region
          _
        $region36: #{tpu_custom_call.1} parent=11 // pred_fallthru
          _
        // Predicated region
        $region37: #{tpu_custom_call.1} parent=11 // pred_check
          %p249 = pneg %p190
        $region38: #{tpu_custom_call.1} parent=11 // pred_check_branch
          %251 = sbr.rel (%p249) target = $region40
        $region39: #{tpu_custom_call.1} parent=11 // pred_region
          _
        $region40: #{tpu_custom_call.1} parent=11 // pred_fallthru
          _
      $region12: #{tpu_custom_call.1} parent=5 // pred_fallthru
        _
      %p252 = scmp.lt.s32.totalorder %s17, 4
      // Predicated region
      $region41: #{tpu_custom_call.1} parent=5 // pred_check
        %p253 = pneg %p252
      $region42: #{tpu_custom_call.1} parent=5 // pred_check_branch
        %255 = sbr.rel (%p253) target = $region44
      $region43: #{tpu_custom_call.1} parent=5 // pred_region
        // Predicated region
        $region45: #{tpu_custom_call.1} parent=43 // pred_check
          %p256 = pneg %p37
        $region46: #{tpu_custom_call.1} parent=43 // pred_check_branch
          %258 = sbr.rel (%p256) target = $region48
        $region47: #{tpu_custom_call.1} parent=43 // pred_region
          %s259 = smul.u32 8, %s17
          %s260 = ssub.s32 25, %s259
          %p261 = scmp.lt.s32.totalorder %s260, 8
          %s262 = scalar_select %p261, %s260, 8
          %s263 = smul.u32 128, %s262
          %p264 = scmp.lt.s32.totalorder %s259, 24
          %s265 = scalar_select %p264, %s259, 24
          %s266 = smul.addr %s265, 8
          %s267 = scalar_lea.vmem %s0, %s266
          %s268 = smul.u32 8, %s17
          %s269 = ssub.s32 25, %s268
          %p270 = scmp.lt.s32.totalorder %s269, 8
          %s271 = scalar_select %p270, %s269, 8
          %s272 = smul.u32 128, %s271
        $region48: #{tpu_custom_call.1} parent=43 // pred_fallthru
          _
      $region44: #{tpu_custom_call.1} parent=5 // pred_fallthru
        _
      %p273 = scmp.le.s32.totalorder 1, %s17
      %p274 = scmp.lt.s32.totalorder %s17, 5
      %p275 = pnand %p273, %p274
      %p276 = pneg %p275
      // Predicated region
      $region49: #{tpu_custom_call.1} parent=5 // pred_check
        _
      $region50: #{tpu_custom_call.1} parent=5 // pred_check_branch
        %278 = sbr.rel (%p275) target = $region52
      $region51: #{tpu_custom_call.1} parent=5 // pred_region
        %s279 = ssub.s32 %s17, 1
        %s280 = smul.u32 8, %s22
        %s281 = ssub.s32 25, %s280
        %p282 = scmp.lt.s32.totalorder %s281, 8
        %s283 = scalar_select %p282, %s281, 8
        %s284 = smul.u32 128, %s283
        %p285 = scmp.lt.s32.totalorder %s280, 24
        %s286 = scalar_select %p285, %s280, 24
        %s287 = smul.addr %s286, 8
        %s288 = scalar_lea.vmem %s0, %s287
        %p289 = pneg %p43
        %p290 = pneg %p40
        %p291 = pneg %p64
        %p292 = pneg %p61
        %p293 = pneg %p85
        %p294 = pneg %p82
        %p295 = pneg %p106
        %p296 = pneg %p103
        %p297 = pneg %p127
        %p298 = pneg %p124
        %p299 = pneg %p148
        %p300 = pneg %p145
        %p301 = pneg %p169
        %p302 = pneg %p166
        %p303 = pneg %p190
        %p304 = pneg %p187
        %p305 = pneg %p216
        %p306 = pneg %p213
        %s307 = sand.u32 %s203, 1
        %s308 = scalar_lea.sflag [#allocation3], %s307
        %s309 = sand.u32 %s203, 1
        %s310 = smul.addr %s309, 64
        %s311 = scalar_lea.vmem [#allocation2], %s310
        %s312 = smul.u32 8, %s22
        %s313 = ssub.s32 25, %s312
        %p314 = scmp.lt.s32.totalorder %s313, 8
        %s315 = scalar_select %p314, %s313, 8
        %s316 = smul.u32 128, %s315
        %p317 = scmp.lt.s32.totalorder %s312, 24
        %s318 = scalar_select %p317, %s312, 24
        %s319 = smul.addr %s318, 8
        %s320 = scalar_lea.vmem %s0, %s319
        %s321 = smul.u32 8, %s22
        %s322 = ssub.s32 25, %s321
        %p323 = scmp.lt.s32.totalorder %s322, 8
        %s324 = scalar_select %p323, %s322, 8
        %s325 = smul.u32 128, %s324
        %s326 = smul.u32 8, %s22
        %s327 = ssub.s32 25, %s326
        %p328 = scmp.lt.s32.totalorder %s327, 8
        %s329 = scalar_select %p328, %s327, 8
        %s330 = smul.u32 128, %s329
        %v332 = vld [vmem:[%s320] sm:$0xff]
        %v333 = vld [vmem:[%s320 + $0x8] sm:$0xff]
        %v334 = vld [vmem:[%s320 + $0x10] sm:$0xff]
        %v335 = vld [vmem:[%s320 + $0x18] sm:$0xff]
        %v336 = vld [vmem:[%s320 + $0x20] sm:$0xff]
        %v337 = vld [vmem:[%s320 + $0x28] sm:$0xff]
        %v338 = vld [vmem:[%s320 + $0x30] sm:$0xff]
        %v339 = vld [vmem:[%s320 + $0x38] sm:$0xff]
        %v340 = vpack.c.bf16 %v333, %v332
        %v341 = vpack.c.bf16 %v335, %v334
        %v342 = vpack.c.bf16 %v337, %v336
        %v343 = vpack.c.bf16 %v339, %v338
        %v344 = vld [vmem:[%s1] sm:$0xf]
        %v345 = vld [vmem:[%s1 + $0x4] sm:$0xf]
        %v346 = vld [vmem:[%s2] sm:$0x1]
        %v348 = vlaneseq
        %v349 = vshrl.u32 %v348, 7
        %v350 = vsub.s32 0, %v349
        %v351 = vrot.slane %v346, %v350
        %v355 = vunpack.c.l.b16 %v344
        %v356 = vunpack.c.l.b16 %v345
        %v357 = vpack.c.b16 %v356, %v355
        %vm359 = vcmask 130048
        %v361 = vsel %vm359, %v340, 0
        %v364 = vsel %vm359, %v341, 0
        %v367 = vsel %vm359, %v342, 0
        %v370 = vsel %vm359, %v343, 0
        %372 = vmatprep.subr.bf16.mxu0 0
        %373 = vmatpush1.bf16.msra.mxu0 %v357
        %374 = vmatprep.subr.bf16.mxu0 0
        %375 = vmatpush1.bf16.msra.mxu0 0
        %376 = vmatprep.subr.bf16.mxu0 0
        %377 = vmatpush1.bf16.msra.mxu0 0
        %378 = vmatprep.subr.bf16.mxu0 0
        %379 = vmatpush1.bf16.msra.mxu0 0
        %380 = vmatprep.subr.bf16.mxu0 0
        %381 = vmatpush1.bf16.msra.mxu0 0
        %382 = vmatprep.subr.bf16.mxu0 0
        %383 = vmatpush1.bf16.msra.mxu0 0
        %384 = vmatprep.subr.bf16.mxu0 0
        %385 = vmatpush1.bf16.msra.mxu0 0
        %386 = vmatprep.subr.bf16.mxu0 0
        %387 = vmatpush1.bf16.msra.mxu0 0
        %388 = vmatprep.subr.bf16.mxu0 0
        %389 = vmatpush1.bf16.msra.mxu0 0
        %390 = vmatprep.subr.bf16.mxu0 0
        %391 = vmatpush1.bf16.msra.mxu0 0
        %392 = vmatprep.subr.bf16.mxu0 0
        %393 = vmatpush1.bf16.msra.mxu0 0
        %394 = vmatprep.subr.bf16.mxu0 0
        %395 = vmatpush1.bf16.msra.mxu0 0
        %396 = vmatprep.subr.bf16.mxu0 0
        %397 = vmatpush1.bf16.msra.mxu0 0
        %398 = vmatprep.subr.bf16.mxu0 0
        %399 = vmatpush1.bf16.msra.mxu0 0
        %400 = vmatprep.subr.bf16.mxu0 0
        %401 = vmatpush1.bf16.msra.mxu0 0
        %402 = vmatprep.subr.bf16.mxu0 0
        %403 = vmatpush1.bf16.msra.mxu0 0
        %404 = vmatprep.mubr.bf16.mxu0 0
        %405 = vmatmul.mubr.bf16.gmra.mrb[0].mxu0 %v361
        %v406 = vpop.f32.mrb[0].mxu0
        %v407 = vadd.f32 %v351, %v406
        %v408 = vpop.f32.mrb[0].mxu0
        %v409 = vpop.f32.mrb[0].mxu0
        %v410 = vadd.f32 %v351, %v409
        %v411 = vpop.f32.mrb[0].mxu0
        %412 = vmatprep.mubr.bf16.mxu0 0
        %413 = vmatmul.mubr.bf16.gmra.mrb[0].mxu0 %v364
        %v414 = vpop.f32.mrb[0].mxu0
        %v415 = vadd.f32 %v351, %v414
        %v416 = vpop.f32.mrb[0].mxu0
        %v417 = vpop.f32.mrb[0].mxu0
        %v418 = vadd.f32 %v351, %v417
        %v419 = vpop.f32.mrb[0].mxu0
        %420 = vmatprep.mubr.bf16.mxu0 0
        %421 = vmatmul.mubr.bf16.gmra.mrb[0].mxu0 %v367
        %v422 = vpop.f32.mrb[0].mxu0
        %v423 = vadd.f32 %v351, %v422
        %v424 = vpop.f32.mrb[0].mxu0
        %v425 = vpop.f32.mrb[0].mxu0
        %v426 = vadd.f32 %v351, %v425
        %v427 = vpop.f32.mrb[0].mxu0
        %428 = vmatprep.mubr.bf16.mxu0 0
        %429 = vmatmul.mubr.bf16.gmra.mrb[0].mxu0 %v370
        %v430 = vpop.f32.mrb[0].mxu0
        %v431 = vadd.f32 %v351, %v430
        %v432 = vpop.f32.mrb[0].mxu0
        %v433 = vpop.f32.mrb[0].mxu0
        %v434 = vadd.f32 %v351, %v433
        %v435 = vpop.f32.mrb[0].mxu0
        %436 = vdwg.mxu0
        %v437 = vmax.f32 %v407, 0.0
        %v438 = vmax.f32 %v410, 0.0
        %v439 = vmax.f32 %v415, 0.0
        %v440 = vmax.f32 %v418, 0.0
        %v441 = vmax.f32 %v423, 0.0
        %v442 = vmax.f32 %v426, 0.0
        %v443 = vmax.f32 %v431, 0.0
        %v444 = vmax.f32 %v434, 0.0
        %v445 = vpack.c.bf16 %v438, %v437
        %v446 = vpack.c.bf16 %v440, %v439
        %v447 = vpack.c.bf16 %v442, %v441
        %v448 = vpack.c.bf16 %v444, %v443
        %v449 = vld [vmem:[%s3] sm:$0xf]
        %v450 = vld [vmem:[%s3 + $0x4] sm:$0xf]
        %v451 = vld [vmem:[%s3 + $0x8] sm:$0xf]
        %v452 = vld [vmem:[%s3 + $0xc] sm:$0xf]
        %v453 = vld [vmem:[%s3 + $0x10] sm:$0xf]
        %v454 = vld [vmem:[%s3 + $0x14] sm:$0xf]
        %v455 = vld [vmem:[%s3 + $0x18] sm:$0xf]
        %v456 = vld [vmem:[%s3 + $0x1c] sm:$0xf]
        %v457 = vld [vmem:[%s3 + $0x20] sm:$0xf]
        %v458 = vld [vmem:[%s3 + $0x24] sm:$0xf]
        %v459 = vld [vmem:[%s3 + $0x28] sm:$0xf]
        %v460 = vld [vmem:[%s3 + $0x2c] sm:$0xf]
        %v461 = vld [vmem:[%s3 + $0x30] sm:$0xf]
        %v462 = vld [vmem:[%s3 + $0x34] sm:$0xf]
        %v463 = vld [vmem:[%s3 + $0x38] sm:$0xf]
        %v464 = vld [vmem:[%s3 + $0x3c] sm:$0xf]
        %v465 = vld [vmem:[%s4] sm:$0x1]
        %v467 = vlaneseq
        %v468 = vshrl.u32 %v467, 7
        %v469 = vsub.s32 0, %v468
        %v470 = vrot.slane %v465, %v469
        %v488 = vunpack.c.l.b16 %v449
        %v489 = vunpack.c.l.b16 %v450
        %v490 = vunpack.c.l.b16 %v451
        %v491 = vunpack.c.l.b16 %v452
        %v492 = vunpack.c.l.b16 %v453
        %v493 = vunpack.c.l.b16 %v454
        %v494 = vunpack.c.l.b16 %v455
        %v495 = vunpack.c.l.b16 %v456
        %v496 = vunpack.c.l.b16 %v457
        %v497 = vunpack.c.l.b16 %v458
        %v498 = vunpack.c.l.b16 %v459
        %v499 = vunpack.c.l.b16 %v460
        %v500 = vunpack.c.l.b16 %v461
        %v501 = vunpack.c.l.b16 %v462
        %v502 = vunpack.c.l.b16 %v463
        %v503 = vunpack.c.l.b16 %v464
        %v504 = vpack.c.b16 %v489, %v488
        %v505 = vpack.c.b16 %v491, %v490
        %v506 = vpack.c.b16 %v493, %v492
        %v507 = vpack.c.b16 %v495, %v494
        %v508 = vpack.c.b16 %v497, %v496
        %v509 = vpack.c.b16 %v499, %v498
        %v510 = vpack.c.b16 %v501, %v500
        %v511 = vpack.c.b16 %v503, %v502
        %520 = vmatprep.subr.bf16.mxu0 0
        %521 = vmatpush1.bf16.msra.mxu0 %v504
        %522 = vmatprep.subr.bf16.mxu0 0
        %523 = vmatpush1.bf16.msra.mxu0 %v505
        %524 = vmatprep.subr.bf16.mxu0 0
        %525 = vmatpush1.bf16.msra.mxu0 %v506
        %526 = vmatprep.subr.bf16.mxu0 0
        %527 = vmatpush1.bf16.msra.mxu0 %v507
        %528 = vmatprep.subr.bf16.mxu0 0
        %529 = vmatpush1.bf16.msra.mxu0 %v508
        %530 = vmatprep.subr.bf16.mxu0 0
        %531 = vmatpush1.bf16.msra.mxu0 %v509
        %532 = vmatprep.subr.bf16.mxu0 0
        %533 = vmatpush1.bf16.msra.mxu0 %v510
        %534 = vmatprep.subr.bf16.mxu0 0
        %535 = vmatpush1.bf16.msra.mxu0 %v511
        %536 = vmatprep.subr.bf16.mxu0 0
        %537 = vmatpush1.bf16.msra.mxu0 0
        %538 = vmatprep.subr.bf16.mxu0 0
        %539 = vmatpush1.bf16.msra.mxu0 0
        %540 = vmatprep.subr.bf16.mxu0 0
        %541 = vmatpush1.bf16.msra.mxu0 0
        %542 = vmatprep.subr.bf16.mxu0 0
        %543 = vmatpush1.bf16.msra.mxu0 0
        %544 = vmatprep.subr.bf16.mxu0 0
        %545 = vmatpush1.bf16.msra.mxu0 0
        %546 = vmatprep.subr.bf16.mxu0 0
        %547 = vmatpush1.bf16.msra.mxu0 0
        %548 = vmatprep.subr.bf16.mxu0 0
        %549 = vmatpush1.bf16.msra.mxu0 0
        %550 = vmatprep.subr.bf16.mxu0 0
        %551 = vmatpush1.bf16.msra.mxu0 0
        %552 = vmatprep.mubr.bf16.mxu0 0
        %553 = vmatmul.mubr.bf16.gmra.mrb[0].mxu0 %v445
        %v554 = vpop.f32.mrb[0].mxu0
        %v555 = vadd.f32 %v470, %v554
        %v556 = vpop.f32.mrb[0].mxu0
        %v557 = vpop.f32.mrb[0].mxu0
        %v558 = vadd.f32 %v470, %v557
        %v559 = vpop.f32.mrb[0].mxu0
        %560 = vmatprep.mubr.bf16.mxu0 0
        %561 = vmatmul.mubr.bf16.gmra.mrb[0].mxu0 %v446
        %v562 = vpop.f32.mrb[0].mxu0
        %v563 = vadd.f32 %v470, %v562
        %v564 = vpop.f32.mrb[0].mxu0
        %v565 = vpop.f32.mrb[0].mxu0
        %v566 = vadd.f32 %v470, %v565
        %v567 = vpop.f32.mrb[0].mxu0
        %568 = vmatprep.mubr.bf16.mxu0 0
        %569 = vmatmul.mubr.bf16.gmra.mrb[0].mxu0 %v447
        %v570 = vpop.f32.mrb[0].mxu0
        %v571 = vadd.f32 %v470, %v570
        %v572 = vpop.f32.mrb[0].mxu0
        %v573 = vpop.f32.mrb[0].mxu0
        %v574 = vadd.f32 %v470, %v573
        %v575 = vpop.f32.mrb[0].mxu0
        %576 = vmatprep.mubr.bf16.mxu0 0
        %577 = vmatmul.mubr.bf16.gmra.mrb[0].mxu0 %v448
        %v578 = vpop.f32.mrb[0].mxu0
        %v579 = vadd.f32 %v470, %v578
        %v580 = vpop.f32.mrb[0].mxu0
        %v581 = vpop.f32.mrb[0].mxu0
        %v582 = vadd.f32 %v470, %v581
        %v583 = vpop.f32.mrb[0].mxu0
        %584 = vdwg.mxu0
        %v585 = vmax.f32 %v555, 0.0
        %v586 = vmax.f32 %v558, 0.0
        %v587 = vmax.f32 %v563, 0.0
        %v588 = vmax.f32 %v566, 0.0
        %v589 = vmax.f32 %v571, 0.0
        %v590 = vmax.f32 %v574, 0.0
        %v591 = vmax.f32 %v579, 0.0
        %v592 = vmax.f32 %v582, 0.0
        %v593 = vpack.c.bf16 %v586, %v585
        %v594 = vpack.c.bf16 %v588, %v587
        %v595 = vpack.c.bf16 %v590, %v589
        %v596 = vpack.c.bf16 %v592, %v591
        %v597 = vld [vmem:[%s5] sm:$0xf]
        %v598 = vld [vmem:[%s5 + $0x4] sm:$0xf]
        %v599 = vld [vmem:[%s5 + $0x8] sm:$0xf]
        %v600 = vld [vmem:[%s5 + $0xc] sm:$0xf]
        %v601 = vld [vmem:[%s5 + $0x10] sm:$0xf]
        %v602 = vld [vmem:[%s5 + $0x14] sm:$0xf]
        %v603 = vld [vmem:[%s5 + $0x18] sm:$0xf]
        %v604 = vld [vmem:[%s5 + $0x1c] sm:$0xf]
        %v605 = vld [vmem:[%s5 + $0x20] sm:$0xf]
        %v606 = vld [vmem:[%s5 + $0x24] sm:$0xf]
        %v607 = vld [vmem:[%s5 + $0x28] sm:$0xf]
        %v608 = vld [vmem:[%s5 + $0x2c] sm:$0xf]
        %v609 = vld [vmem:[%s5 + $0x30] sm:$0xf]
        %v610 = vld [vmem:[%s5 + $0x34] sm:$0xf]
        %v611 = vld [vmem:[%s5 + $0x38] sm:$0xf]
        %v612 = vld [vmem:[%s5 + $0x3c] sm:$0xf]
        %v613 = vld [vmem:[%s6] sm:$0xf]
        %v614 = vld [vmem:[%s6 + $0x4] sm:$0xf]
        %v615 = vld [vmem:[%s6 + $0x8] sm:$0xf]
        %v616 = vld [vmem:[%s6 + $0xc] sm:$0xf]
        %v617 = vld [vmem:[%s6 + $0x10] sm:$0xf]
        %v618 = vld [vmem:[%s6 + $0x14] sm:$0xf]
        %v619 = vld [vmem:[%s6 + $0x18] sm:$0xf]
        %v620 = vld [vmem:[%s6 + $0x1c] sm:$0xf]
        %v621 = vld [vmem:[%s6 + $0x20] sm:$0xf]
        %v622 = vld [vmem:[%s6 + $0x24] sm:$0xf]
        %v623 = vld [vmem:[%s6 + $0x28] sm:$0xf]
        %v624 = vld [vmem:[%s6 + $0x2c] sm:$0xf]
        %v625 = vld [vmem:[%s6 + $0x30] sm:$0xf]
        %v626 = vld [vmem:[%s6 + $0x34] sm:$0xf]
        %v627 = vld [vmem:[%s6 + $0x38] sm:$0xf]
        %v628 = vld [vmem:[%s6 + $0x3c] sm:$0xf]
        %v645 = vunpack.c.l.b16 %v613
        %v646 = vunpack.c.l.b16 %v614
        %v647 = vunpack.c.l.b16 %v615
        %v648 = vunpack.c.l.b16 %v616
        %v649 = vunpack.c.l.b16 %v617
        %v650 = vunpack.c.l.b16 %v618
        %v651 = vunpack.c.l.b16 %v619
        %v652 = vunpack.c.l.b16 %v620
        %v653 = vunpack.c.l.b16 %v621
        %v654 = vunpack.c.l.b16 %v622
        %v655 = vunpack.c.l.b16 %v623
        %v656 = vunpack.c.l.b16 %v624
        %v657 = vunpack.c.l.b16 %v625
        %v658 = vunpack.c.l.b16 %v626
        %v659 = vunpack.c.l.b16 %v627
        %v660 = vunpack.c.l.b16 %v628
        %v661 = vpack.c.b16 %v646, %v645
        %v662 = vpack.c.b16 %v648, %v647
        %v663 = vpack.c.b16 %v650, %v649
        %v664 = vpack.c.b16 %v652, %v651
        %v665 = vpack.c.b16 %v654, %v653
        %v666 = vpack.c.b16 %v656, %v655
        %v667 = vpack.c.b16 %v658, %v657
        %v668 = vpack.c.b16 %v660, %v659
        %677 = vmatprep.subr.bf16.mxu0 0
        %678 = vmatpush1.bf16.msra.mxu0 %v661
        %679 = vmatprep.subr.bf16.mxu0 0
        %680 = vmatpush1.bf16.msra.mxu0 %v662
        %681 = vmatprep.subr.bf16.mxu0 0
        %682 = vmatpush1.bf16.msra.mxu0 %v663
        %683 = vmatprep.subr.bf16.mxu0 0
        %684 = vmatpush1.bf16.msra.mxu0 %v664
        %685 = vmatprep.subr.bf16.mxu0 0
        %686 = vmatpush1.bf16.msra.mxu0 %v665
        %687 = vmatprep.subr.bf16.mxu0 0
        %688 = vmatpush1.bf16.msra.mxu0 %v666
        %689 = vmatprep.subr.bf16.mxu0 0
        %690 = vmatpush1.bf16.msra.mxu0 %v667
        %691 = vmatprep.subr.bf16.mxu0 0
        %692 = vmatpush1.bf16.msra.mxu0 %v668
        %693 = vmatprep.subr.bf16.mxu0 0
        %694 = vmatpush1.bf16.msra.mxu0 0
        %695 = vmatprep.subr.bf16.mxu0 0
        %696 = vmatpush1.bf16.msra.mxu0 0
        %697 = vmatprep.subr.bf16.mxu0 0
        %698 = vmatpush1.bf16.msra.mxu0 0
        %699 = vmatprep.subr.bf16.mxu0 0
        %700 = vmatpush1.bf16.msra.mxu0 0
        %701 = vmatprep.subr.bf16.mxu0 0
        %702 = vmatpush1.bf16.msra.mxu0 0
        %703 = vmatprep.subr.bf16.mxu0 0
        %704 = vmatpush1.bf16.msra.mxu0 0
        %705 = vmatprep.subr.bf16.mxu0 0
        %706 = vmatpush1.bf16.msra.mxu0 0
        %707 = vmatprep.subr.bf16.mxu0 0
        %708 = vmatpush1.bf16.msra.mxu0 0
        %709 = vmatprep.mubr.bf16.mxu0 0
        %710 = vmatmul.mubr.bf16.gmra.mrb[0].mxu0 %v593
        %v711 = vpop.f32.mrb[0].mxu0
        %v712 = vadd.f32 0.0, %v711
        %v713 = vpop.f32.mrb[0].mxu0
        %v714 = vpop.f32.mrb[0].mxu0
        %v715 = vadd.f32 0.0, %v714
        %v716 = vpop.f32.mrb[0].mxu0
        %717 = vmatprep.mubr.bf16.mxu0 0
        %718 = vmatmul.mubr.bf16.gmra.mrb[0].mxu0 %v594
        %v719 = vpop.f32.mrb[0].mxu0
        %v720 = vadd.f32 0.0, %v719
        %v721 = vpop.f32.mrb[0].mxu0
        %v722 = vpop.f32.mrb[0].mxu0
        %v723 = vadd.f32 0.0, %v722
        %v724 = vpop.f32.mrb[0].mxu0
        %725 = vmatprep.mubr.bf16.mxu0 0
        %726 = vmatmul.mubr.bf16.gmra.mrb[0].mxu0 %v595
        %v727 = vpop.f32.mrb[0].mxu0
        %v728 = vadd.f32 0.0, %v727
        %v729 = vpop.f32.mrb[0].mxu0
        %v730 = vpop.f32.mrb[0].mxu0
        %v731 = vadd.f32 0.0, %v730
        %v732 = vpop.f32.mrb[0].mxu0
        %733 = vmatprep.mubr.bf16.mxu0 0
        %734 = vmatmul.mubr.bf16.gmra.mrb[0].mxu0 %v596
        %v735 = vpop.f32.mrb[0].mxu0
        %v736 = vadd.f32 0.0, %v735
        %v737 = vpop.f32.mrb[0].mxu0
        %v738 = vpop.f32.mrb[0].mxu0
        %v739 = vadd.f32 0.0, %v738
        %v740 = vpop.f32.mrb[0].mxu0
        %741 = vdwg.mxu0
        %v758 = vunpack.c.l.b16 %v597
        %v759 = vunpack.c.l.b16 %v598
        %v760 = vunpack.c.l.b16 %v599
        %v761 = vunpack.c.l.b16 %v600
        %v762 = vunpack.c.l.b16 %v601
        %v763 = vunpack.c.l.b16 %v602
        %v764 = vunpack.c.l.b16 %v603
        %v765 = vunpack.c.l.b16 %v604
        %v766 = vunpack.c.l.b16 %v605
        %v767 = vunpack.c.l.b16 %v606
        %v768 = vunpack.c.l.b16 %v607
        %v769 = vunpack.c.l.b16 %v608
        %v770 = vunpack.c.l.b16 %v609
        %v771 = vunpack.c.l.b16 %v610
        %v772 = vunpack.c.l.b16 %v611
        %v773 = vunpack.c.l.b16 %v612
        %v774 = vpack.c.b16 %v759, %v758
        %v775 = vpack.c.b16 %v761, %v760
        %v776 = vpack.c.b16 %v763, %v762
        %v777 = vpack.c.b16 %v765, %v764
        %v778 = vpack.c.b16 %v767, %v766
        %v779 = vpack.c.b16 %v769, %v768
        %v780 = vpack.c.b16 %v771, %v770
        %v781 = vpack.c.b16 %v773, %v772
        %790 = vmatprep.subr.bf16.mxu0 0
        %791 = vmatpush1.bf16.msra.mxu0 %v774
        %792 = vmatprep.subr.bf16.mxu0 0
        %793 = vmatpush1.bf16.msra.mxu0 %v775
        %794 = vmatprep.subr.bf16.mxu0 0
        %795 = vmatpush1.bf16.msra.mxu0 %v776
        %796 = vmatprep.subr.bf16.mxu0 0
        %797 = vmatpush1.bf16.msra.mxu0 %v777
        %798 = vmatprep.subr.bf16.mxu0 0
        %799 = vmatpush1.bf16.msra.mxu0 %v778
        %800 = vmatprep.subr.bf16.mxu0 0
        %801 = vmatpush1.bf16.msra.mxu0 %v779
        %802 = vmatprep.subr.bf16.mxu0 0
        %803 = vmatpush1.bf16.msra.mxu0 %v780
        %804 = vmatprep.subr.bf16.mxu0 0
        %805 = vmatpush1.bf16.msra.mxu0 %v781
        %806 = vmatprep.subr.bf16.mxu0 0
        %807 = vmatpush1.bf16.msra.mxu0 0
        %808 = vmatprep.subr.bf16.mxu0 0
        %809 = vmatpush1.bf16.msra.mxu0 0
        %810 = vmatprep.subr.bf16.mxu0 0
        %811 = vmatpush1.bf16.msra.mxu0 0
        %812 = vmatprep.subr.bf16.mxu0 0
        %813 = vmatpush1.bf16.msra.mxu0 0
        %814 = vmatprep.subr.bf16.mxu0 0
        %815 = vmatpush1.bf16.msra.mxu0 0
        %816 = vmatprep.subr.bf16.mxu0 0
        %817 = vmatpush1.bf16.msra.mxu0 0
        %818 = vmatprep.subr.bf16.mxu0 0
        %819 = vmatpush1.bf16.msra.mxu0 0
        %820 = vmatprep.subr.bf16.mxu0 0
        %821 = vmatpush1.bf16.msra.mxu0 0
        %822 = vmatprep.mubr.bf16.mxu0 0
        %823 = vmatmul.mubr.bf16.gmra.mrb[0].mxu0 %v445
        %v824 = vpop.f32.mrb[0].mxu0
        %v825 = vadd.f32 %v712, %v824
        %v826 = vpop.f32.mrb[0].mxu0
        %v827 = vpop.f32.mrb[0].mxu0
        %v828 = vadd.f32 %v715, %v827
        %v829 = vpop.f32.mrb[0].mxu0
        %830 = vmatprep.mubr.bf16.mxu0 0
        %831 = vmatmul.mubr.bf16.gmra.mrb[0].mxu0 %v446
        %v832 = vpop.f32.mrb[0].mxu0
        %v833 = vadd.f32 %v720, %v832
        %v834 = vpop.f32.mrb[0].mxu0
        %v835 = vpop.f32.mrb[0].mxu0
        %v836 = vadd.f32 %v723, %v835
        %v837 = vpop.f32.mrb[0].mxu0
        %838 = vmatprep.mubr.bf16.mxu0 0
        %839 = vmatmul.mubr.bf16.gmra.mrb[0].mxu0 %v447
        %v840 = vpop.f32.mrb[0].mxu0
        %v841 = vadd.f32 %v728, %v840
        %v842 = vpop.f32.mrb[0].mxu0
        %v843 = vpop.f32.mrb[0].mxu0
        %v844 = vadd.f32 %v731, %v843
        %v845 = vpop.f32.mrb[0].mxu0
        %846 = vmatprep.mubr.bf16.mxu0 0
        %847 = vmatmul.mubr.bf16.gmra.mrb[0].mxu0 %v448
        %v848 = vpop.f32.mrb[0].mxu0
        %v849 = vadd.f32 %v736, %v848
        %v850 = vpop.f32.mrb[0].mxu0
        %v851 = vpop.f32.mrb[0].mxu0
        %v852 = vadd.f32 %v739, %v851
        %v853 = vpop.f32.mrb[0].mxu0
        %854 = vdwg.mxu0
        %v855 = vld [vmem:[%s7] sm:$0x1]
        %v857 = vlaneseq
        %v858 = vshrl.u32 %v857, 7
        %v859 = vsub.s32 0, %v858
        %v860 = vrot.slane %v855, %v859
        %v862 = vadd.f32 %v825, %v860
        %v863 = vadd.f32 %v828, %v860
        %v864 = vadd.f32 %v833, %v860
        %v865 = vadd.f32 %v836, %v860
        %v866 = vadd.f32 %v841, %v860
        %v867 = vadd.f32 %v844, %v860
        %v868 = vadd.f32 %v849, %v860
        %v869 = vadd.f32 %v852, %v860
        %870 = vst [vmem:[%s311] sm:$0xff] %v862
        %871 = vst [vmem:[%s311 + $0x8] sm:$0xff] %v863
        %872 = vst [vmem:[%s311 + $0x10] sm:$0xff] %v864
        %873 = vst [vmem:[%s311 + $0x18] sm:$0xff] %v865
        %874 = vst [vmem:[%s311 + $0x20] sm:$0xff] %v866
        %875 = vst [vmem:[%s311 + $0x28] sm:$0xff] %v867
        %876 = vst [vmem:[%s311 + $0x30] sm:$0xff] %v868
        %877 = vst [vmem:[%s311 + $0x38] sm:$0xff] %v869
        %s878 = sand.u32 %s203, 1
        %s879 = scalar_lea.sflag [#allocation3], %s878
        %s880 = sand.u32 %s203, 1
        %s881 = smul.addr %s880, 64
        %s882 = scalar_lea.vmem [#allocation2], %s881
        // Predicated region
        $region53: #{tpu_custom_call.1} parent=51 // pred_check
          %p883 = pneg %p213
        $region54: #{tpu_custom_call.1} parent=51 // pred_check_branch
          %885 = sbr.rel (%p883) target = $region56
        $region55: #{tpu_custom_call.1} parent=51 // pred_region
          %s886 = smul.u32 8, %s22
          %s887 = ssub.s32 25, %s886
          %p888 = scmp.lt.s32.totalorder %s887, 8
          %s889 = scalar_select %p888, %s887, 8
          %s890 = smul.u32 128, %s889
          %s892 = ssub.s32 1024, %s890
          %893 = vsyncadd %s879, %s892
          %p894 = scmp.ne.s32.totalorder 0, %s890
          %s895 = smul.addr %s886, 128
          %s896 = scalar_lea.hbm %s8, %s895
          %s897 = smul.u32 8, %s889
          %s898 = sshll.u32 %s882, 4
          %s899 = int_to_ptr.vmem [resolvable:$true] %s898
          %s900 = sshll.u32 %s897, 4
          %904 = dma.vmem_to_hbm [thread:$0]  (%p894), %s899, %s900, %s896, %s879, 128, 128, 8
        $region56: #{tpu_custom_call.1} parent=51 // pred_fallthru
          _
      $region52: #{tpu_custom_call.1} parent=5 // pred_fallthru
        _
      %p905 = scmp.le.s32.totalorder 2, %s17
      // Predicated region
      $region57: #{tpu_custom_call.1} parent=5 // pred_check
        %p906 = pneg %p905
      $region58: #{tpu_custom_call.1} parent=5 // pred_check_branch
        %908 = sbr.rel (%p906) target = $region60
      $region59: #{tpu_custom_call.1} parent=5 // pred_region
        %s909 = ssub.s32 %s17, 2
        // Predicated region
        $region61: #{tpu_custom_call.1} parent=59 // pred_check
          %p910 = pneg %p219
        $region62: #{tpu_custom_call.1} parent=59 // pred_check_branch
          %912 = sbr.rel (%p910) target = $region64
        $region63: #{tpu_custom_call.1} parent=59 // pred_region
          %s913 = sand.u32 %s204, 1
          %s914 = scalar_lea.sflag [#allocation3], %s913
          %s915 = sand.u32 %s204, 1
          %s916 = smul.addr %s915, 64
          %s917 = scalar_lea.vmem [#allocation2], %s916
          %918 = dma.done %s914, 1024
        $region64: #{tpu_custom_call.1} parent=59 // pred_fallthru
          _
      $region60: #{tpu_custom_call.1} parent=5 // pred_fallthru
        _
    $region6: #{tpu_custom_call.1} parent=1 // loop_footer
      %s21 = sadd.s32 1, %s17
    $region7: #{tpu_custom_call.1} parent=1 // loop_footer_branch
      %16 = sbr.rel target = $region3
    $region8: #{tpu_custom_call.1} parent=1 // loop_exit
      _
    %919 = vsyncpa [#allocation3], 1
    %s920 = scalar_lea.sflag [#allocation3], 1
    %921 = vsyncpa %s920, 1

// kernel: tpu_custom_call.1
$region0: #{tpu_custom_call.1}
  #allocation0 [shape = 'u32[]', space=smem, size = 0x4, offset = 0x4, fixed_abs, tag = 'smem constant byte address 0x4 - core index']
  #allocation1 [shape = 'u32[144,128]{1,0:T(1,128)}', space=vmem, size = 0x12000, scoped, tag = 'internal scratch']
  %s0 = inlined_call_operand.vmem [shape: f32[200,16], index: 0, kind: input, shape index: {}]
  %s1 = inlined_call_operand.vmem [shape: bf16[16,128], index: 1, kind: input, shape index: {}]
  %s2 = inlined_call_operand.vmem [shape: f32[1,128], index: 2, kind: input, shape index: {}]
  %s3 = inlined_call_operand.vmem [shape: bf16[128,128], index: 3, kind: input, shape index: {}]
  %s4 = inlined_call_operand.vmem [shape: f32[1,128], index: 4, kind: input, shape index: {}]
  %s5 = inlined_call_operand.vmem [shape: bf16[128,128], index: 5, kind: input, shape index: {}]
  %s6 = inlined_call_operand.vmem [shape: bf16[128,128], index: 6, kind: input, shape index: {}]
  %s7 = inlined_call_operand.vmem [shape: f32[1,128], index: 7, kind: input, shape index: {}]
  %s8 = inlined_call_operand.hbm [shape: f32[200,128], index: 8, kind: output, shape index: {}]
  %s9 = sld [smem:[#allocation0]]
  $region65: #{tpu_custom_call.1} parent=0
    _
  %s11 = ssub.s32 1, %s9
  %s12 = scalar_select 0, %s11, %s9
  $region1: #{tpu_custom_call.1} parent=0
    #allocation2 [shape = 'u8[65536]{0}', space=vmem, size = 0x10000, scoped, tag = 'output window, operand 0']
    #allocation3 [shape = 's32[2]{0}', space=sflag, size = 0x8, scoped, tag = 'scoped memory for tpu_custom_call.1']
    %13 = vsyncpa [#allocation3], 0
    %s14 = scalar_lea.sflag [#allocation3], 1
    %15 = vsyncpa %s14, 0
    loop: start=0, step=1, limit=6
    $region2: #{tpu_custom_call.1} parent=1 // loop_pre_header
      _
    $region3: #{tpu_custom_call.1} parent=1 // loop_header
      %s17 = sphi 0, %s21
      %p18 = scmp.ge.s32.totalorder %s17, 6
      %s27 = sphi 0, %s29
      %s30 = sphi 0, %s27
      %s31 = sphi 0, %s30
      %s47 = sphi 0, %s31
      %s51 = sphi 0, %s51
      %s53 = sphi 0, %s51
      %s54 = sphi 0, %s53
      %s68 = sphi 0, %s54
      %s72 = sphi 0, %s72
      %s74 = sphi 0, %s72
      %s75 = sphi 0, %s74
      %s89 = sphi 0, %s75
      %s93 = sphi 0, %s93
      %s95 = sphi 0, %s93
      %s96 = sphi 0, %s95
      %s110 = sphi 0, %s96
      %s114 = sphi 0, %s114
      %s116 = sphi 0, %s114
      %s117 = sphi 0, %s116
      %s131 = sphi 0, %s117
      %s135 = sphi 0, %s135
      %s137 = sphi 0, %s135
      %s138 = sphi 0, %s137
      %s152 = sphi 0, %s138
      %s156 = sphi 0, %s156
      %s158 = sphi 0, %s156
      %s159 = sphi 0, %s158
      %s173 = sphi 0, %s159
      %s177 = sphi 0, %s177
      %s179 = sphi 0, %s177
      %s180 = sphi 0, %s179
      %s194 = sphi 0, %s180
      %s200 = sphi 0, %s202
      %s203 = sphi 0, %s200
      %s204 = sphi 0, %s203
      %s220 = sphi 0, %s204
    $region4: #{tpu_custom_call.1} parent=1 // loop_header_branch
      %20 = sbr.rel (%p18) target = $region8
    $region5: #{tpu_custom_call.1} parent=1 // loop_body
      %s22 = ssub.s32 %s17, 1
      %s23 = ssub.s32 %s17, 2
      %s24 = sadd.s32 %s17, 1
      %s25 = ssub.s32 %s17, %s24
      %p26 = scmp.eq.s32.totalorder %s25, 0
      %s28 = sadd.s32 %s27, 1
      %s29 = scalar_select %p26, %s27, %s28
      %p32 = pneg %p26
      %p33 = scmp.eq.s32.totalorder %s17, 3
      %p34 = por %p32, %p33
      %p35 = scmp.ne.s32.totalorder %s27, %s30
      %p36 = scmp.eq.s32.totalorder %s17, 0
      %p37 = por %p35, %p36
      %p38 = scmp.ne.s32.totalorder %s27, %s30
      %p39 = scmp.eq.s32.totalorder %s22, 3
      %p40 = por %p38, %p39
      %p41 = scmp.ne.s32.totalorder %s30, %s31
      %p42 = scmp.eq.s32.totalorder %s22, 0
      %p43 = por %p41, %p42
      %p44 = scmp.ne.s32.totalorder %s30, %s31
      %p45 = scmp.eq.s32.totalorder %s23, 3
      %p46 = por %p44, %p45
      %p48 = scmp.ne.s32.totalorder %s31, %s47
      %p49 = scmp.eq.s32.totalorder %s23, 0
      %p50 = por %p48, %p49
      %s52 = sadd.s32 %s51, 1
      %p55 = scmp.eq.s32.totalorder %s17, 3
      %p56 = scmp.ne.s32.totalorder %s51, %s53
      %p57 = scmp.eq.s32.totalorder %s17, 0
      %p58 = por %p56, %p57
      %p59 = scmp.ne.s32.totalorder %s51, %s53
      %p60 = scmp.eq.s32.totalorder %s22, 3
      %p61 = por %p59, %p60
      %p62 = scmp.ne.s32.totalorder %s53, %s54
      %p63 = scmp.eq.s32.totalorder %s22, 0
      %p64 = por %p62, %p63
      %p65 = scmp.ne.s32.totalorder %s53, %s54
      %p66 = scmp.eq.s32.totalorder %s23, 3
      %p67 = por %p65, %p66
      %p69 = scmp.ne.s32.totalorder %s54, %s68
      %p70 = scmp.eq.s32.totalorder %s23, 0
      %p71 = por %p69, %p70
      %s73 = sadd.s32 %s72, 1
      %p76 = scmp.eq.s32.totalorder %s17, 3
      %p77 = scmp.ne.s32.totalorder %s72, %s74
      %p78 = scmp.eq.s32.totalorder %s17, 0
      %p79 = por %p77, %p78
      %p80 = scmp.ne.s32.totalorder %s72, %s74
      %p81 = scmp.eq.s32.totalorder %s22, 3
      %p82 = por %p80, %p81
      %p83 = scmp.ne.s32.totalorder %s74, %s75
      %p84 = scmp.eq.s32.totalorder %s22, 0
      %p85 = por %p83, %p84
      %p86 = scmp.ne.s32.totalorder %s74, %s75
      %p87 = scmp.eq.s32.totalorder %s23, 3
      %p88 = por %p86, %p87
      %p90 = scmp.ne.s32.totalorder %s75, %s89
      %p91 = scmp.eq.s32.totalorder %s23, 0
      %p92 = por %p90, %p91
      %s94 = sadd.s32 %s93, 1
      %p97 = scmp.eq.s32.totalorder %s17, 3
      %p98 = scmp.ne.s32.totalorder %s93, %s95
      %p99 = scmp.eq.s32.totalorder %s17, 0
      %p100 = por %p98, %p99
      %p101 = scmp.ne.s32.totalorder %s93, %s95
      %p102 = scmp.eq.s32.totalorder %s22, 3
      %p103 = por %p101, %p102
      %p104 = scmp.ne.s32.totalorder %s95, %s96
      %p105 = scmp.eq.s32.totalorder %s22, 0
      %p106 = por %p104, %p105
      %p107 = scmp.ne.s32.totalorder %s95, %s96
      %p108 = scmp.eq.s32.totalorder %s23, 3
      %p109 = por %p107, %p108
      %p111 = scmp.ne.s32.totalorder %s96, %s110
      %p112 = scmp.eq.s32.totalorder %s23, 0
      %p113 = por %p111, %p112
      %s115 = sadd.s32 %s114, 1
      %p118 = scmp.eq.s32.totalorder %s17, 3
      %p119 = scmp.ne.s32.totalorder %s114, %s116
      %p120 = scmp.eq.s32.totalorder %s17, 0
      %p121 = por %p119, %p120
      %p122 = scmp.ne.s32.totalorder %s114, %s116
      %p123 = scmp.eq.s32.totalorder %s22, 3
      %p124 = por %p122, %p123
      %p125 = scmp.ne.s32.totalorder %s116, %s117
      %p126 = scmp.eq.s32.totalorder %s22, 0
      %p127 = por %p125, %p126
      %p128 = scmp.ne.s32.totalorder %s116, %s117
      %p129 = scmp.eq.s32.totalorder %s23, 3
      %p130 = por %p128, %p129
      %p132 = scmp.ne.s32.totalorder %s117, %s131
      %p133 = scmp.eq.s32.totalorder %s23, 0
      %p134 = por %p132, %p133
      %s136 = sadd.s32 %s135, 1
      %p139 = scmp.eq.s32.totalorder %s17, 3
      %p140 = scmp.ne.s32.totalorder %s135, %s137
      %p141 = scmp.eq.s32.totalorder %s17, 0
      %p142 = por %p140, %p141
      %p143 = scmp.ne.s32.totalorder %s135, %s137
      %p144 = scmp.eq.s32.totalorder %s22, 3
      %p145 = por %p143, %p144
      %p146 = scmp.ne.s32.totalorder %s137, %s138
      %p147 = scmp.eq.s32.totalorder %s22, 0
      %p148 = por %p146, %p147
      %p149 = scmp.ne.s32.totalorder %s137, %s138
      %p150 = scmp.eq.s32.totalorder %s23, 3
      %p151 = por %p149, %p150
      %p153 = scmp.ne.s32.totalorder %s138, %s152
      %p154 = scmp.eq.s32.totalorder %s23, 0
      %p155 = por %p153, %p154
      %s157 = sadd.s32 %s156, 1
      %p160 = scmp.eq.s32.totalorder %s17, 3
      %p161 = scmp.ne.s32.totalorder %s156, %s158
      %p162 = scmp.eq.s32.totalorder %s17, 0
      %p163 = por %p161, %p162
      %p164 = scmp.ne.s32.totalorder %s156, %s158
      %p165 = scmp.eq.s32.totalorder %s22, 3
      %p166 = por %p164, %p165
      %p167 = scmp.ne.s32.totalorder %s158, %s159
      %p168 = scmp.eq.s32.totalorder %s22, 0
      %p169 = por %p167, %p168
      %p170 = scmp.ne.s32.totalorder %s158, %s159
      %p171 = scmp.eq.s32.totalorder %s23, 3
      %p172 = por %p170, %p171
      %p174 = scmp.ne.s32.totalorder %s159, %s173
      %p175 = scmp.eq.s32.totalorder %s23, 0
      %p176 = por %p174, %p175
      %s178 = sadd.s32 %s177, 1
      %p181 = scmp.eq.s32.totalorder %s17, 3
      %p182 = scmp.ne.s32.totalorder %s177, %s179
      %p183 = scmp.eq.s32.totalorder %s17, 0
      %p184 = por %p182, %p183
      %p185 = scmp.ne.s32.totalorder %s177, %s179
      %p186 = scmp.eq.s32.totalorder %s22, 3
      %p187 = por %p185, %p186
      %p188 = scmp.ne.s32.totalorder %s179, %s180
      %p189 = scmp.eq.s32.totalorder %s22, 0
      %p190 = por %p188, %p189
      %p191 = scmp.ne.s32.totalorder %s179, %s180
      %p192 = scmp.eq.s32.totalorder %s23, 3
      %p193 = por %p191, %p192
      %p195 = scmp.ne.s32.totalorder %s180, %s194
      %p196 = scmp.eq.s32.totalorder %s23, 0
      %p197 = por %p195, %p196
      %s198 = ssub.s32 %s17, %s24
      %p199 = scmp.eq.s32.totalorder %s198, 0
      %s201 = sadd.s32 %s200, 1
      %s202 = scalar_select %p199, %s200, %s201
      %p205 = pneg %p199
      %p206 = scmp.eq.s32.totalorder %s17, 3
      %p207 = por %p205, %p206
      %p208 = scmp.ne.s32.totalorder %s200, %s203
      %p209 = scmp.eq.s32.totalorder %s17, 0
      %p210 = por %p208, %p209
      %p211 = scmp.ne.s32.totalorder %s200, %s203
      %p212 = scmp.eq.s32.totalorder %s22, 3
      %p213 = por %p211, %p212
      %p214 = scmp.ne.s32.totalorder %s203, %s204
      %p215 = scmp.eq.s32.totalorder %s22, 0
      %p216 = por %p214, %p215
      %p217 = scmp.ne.s32.totalorder %s203, %s204
      %p218 = scmp.eq.s32.totalorder %s23, 3
      %p219 = por %p217, %p218
      %p221 = scmp.ne.s32.totalorder %s204, %s220
      %p222 = scmp.eq.s32.totalorder %s23, 0
      %p223 = por %p221, %p222
      %p224 = scmp.le.s32.totalorder 1, %s17
      %p225 = scmp.lt.s32.totalorder %s17, 5
      %p226 = pnand %p224, %p225
      %p227 = pneg %p226
      // Predicated region
      $region9: #{tpu_custom_call.1} parent=5 // pred_check
        _
      $region10: #{tpu_custom_call.1} parent=5 // pred_check_branch
        %229 = sbr.rel (%p226) target = $region12
      $region11: #{tpu_custom_call.1} parent=5 // pred_region
        %s230 = ssub.s32 %s17, 1
        // Predicated region
        $region13: #{tpu_custom_call.1} parent=11 // pred_check
          %p231 = pneg %p64
        $region14: #{tpu_custom_call.1} parent=11 // pred_check_branch
          %233 = sbr.rel (%p231) target = $region16
        $region15: #{tpu_custom_call.1} parent=11 // pred_region
          _
        $region16: #{tpu_custom_call.1} parent=11 // pred_fallthru
          _
        // Predicated region
        $region17: #{tpu_custom_call.1} parent=11 // pred_check
          %p234 = pneg %p85
        $region18: #{tpu_custom_call.1} parent=11 // pred_check_branch
          %236 = sbr.rel (%p234) target = $region20
        $region19: #{tpu_custom_call.1} parent=11 // pred_region
          _
        $region20: #{tpu_custom_call.1} parent=11 // pred_fallthru
          _
        // Predicated region
        $region21: #{tpu_custom_call.1} parent=11 // pred_check
          %p237 = pneg %p106
        $region22: #{tpu_custom_call.1} parent=11 // pred_check_branch
          %239 = sbr.rel (%p237) target = $region24
        $region23: #{tpu_custom_call.1} parent=11 // pred_region
          _
        $region24: #{tpu_custom_call.1} parent=11 // pred_fallthru
          _
        // Predicated region
        $region25: #{tpu_custom_call.1} parent=11 // pred_check
          %p240 = pneg %p127
        $region26: #{tpu_custom_call.1} parent=11 // pred_check_branch
          %242 = sbr.rel (%p240) target = $region28
        $region27: #{tpu_custom_call.1} parent=11 // pred_region
          _
        $region28: #{tpu_custom_call.1} parent=11 // pred_fallthru
          _
        // Predicated region
        $region29: #{tpu_custom_call.1} parent=11 // pred_check
          %p243 = pneg %p148
        $region30: #{tpu_custom_call.1} parent=11 // pred_check_branch
          %245 = sbr.rel (%p243) target = $region32
        $region31: #{tpu_custom_call.1} parent=11 // pred_region
          _
        $region32: #{tpu_custom_call.1} parent=11 // pred_fallthru
          _
        // Predicated region
        $region33: #{tpu_custom_call.1} parent=11 // pred_check
          %p246 = pneg %p169
        $region34: #{tpu_custom_call.1} parent=11 // pred_check_branch
          %248 = sbr.rel (%p246) target = $region36
        $region35: #{tpu_custom_call.1} parent=11 // pred_region
          _
        $region36: #{tpu_custom_call.1} parent=11 // pred_fallthru
          _
        // Predicated region
        $region37: #{tpu_custom_call.1} parent=11 // pred_check
          %p249 = pneg %p190
        $region38: #{tpu_custom_call.1} parent=11 // pred_check_branch
          %251 = sbr.rel (%p249) target = $region40
        $region39: #{tpu_custom_call.1} parent=11 // pred_region
          _
        $region40: #{tpu_custom_call.1} parent=11 // pred_fallthru
          _
      $region12: #{tpu_custom_call.1} parent=5 // pred_fallthru
        _
      %p252 = scmp.lt.s32.totalorder %s17, 4
      // Predicated region
      $region41: #{tpu_custom_call.1} parent=5 // pred_check
        %p253 = pneg %p252
      $region42: #{tpu_custom_call.1} parent=5 // pred_check_branch
        %255 = sbr.rel (%p253) target = $region44
      $region43: #{tpu_custom_call.1} parent=5 // pred_region
        // Predicated region
        $region45: #{tpu_custom_call.1} parent=43 // pred_check
          %p256 = pneg %p37
        $region46: #{tpu_custom_call.1} parent=43 // pred_check_branch
          %258 = sbr.rel (%p256) target = $region48
        $region47: #{tpu_custom_call.1} parent=43 // pred_region
          %s259 = smul.u32 8, %s17
          %s260 = ssub.s32 25, %s259
          %p261 = scmp.lt.s32.totalorder %s260, 8
          %s262 = scalar_select %p261, %s260, 8
          %s263 = smul.u32 128, %s262
          %p264 = scmp.lt.s32.totalorder %s259, 24
          %s265 = scalar_select %p264, %s259, 24
          %s266 = smul.addr %s265, 8
          %s267 = scalar_lea.vmem %s0, %s266
          %s268 = smul.u32 8, %s17
          %s269 = ssub.s32 25, %s268
          %p270 = scmp.lt.s32.totalorder %s269, 8
          %s271 = scalar_select %p270, %s269, 8
          %s272 = smul.u32 128, %s271
        $region48: #{tpu_custom_call.1} parent=43 // pred_fallthru
          _
      $region44: #{tpu_custom_call.1} parent=5 // pred_fallthru
        _
      %p273 = scmp.le.s32.totalorder 1, %s17
      %p274 = scmp.lt.s32.totalorder %s17, 5
      %p275 = pnand %p273, %p274
      %p276 = pneg %p275
      // Predicated region
      $region49: #{tpu_custom_call.1} parent=5 // pred_check
        _
      $region50: #{tpu_custom_call.1} parent=5 // pred_check_branch
        %278 = sbr.rel (%p275) target = $region52
      $region51: #{tpu_custom_call.1} parent=5 // pred_region
        %s279 = ssub.s32 %s17, 1
        %s280 = smul.u32 8, %s22
        %s281 = ssub.s32 25, %s280
        %p282 = scmp.lt.s32.totalorder %s281, 8
        %s283 = scalar_select %p282, %s281, 8
        %s284 = smul.u32 128, %s283
        %p285 = scmp.lt.s32.totalorder %s280, 24
        %s286 = scalar_select %p285, %s280, 24
        %s287 = smul.addr %s286, 8
        %s288 = scalar_lea.vmem %s0, %s287
        %p289 = pneg %p43
        %p290 = pneg %p40
        %p291 = pneg %p64
        %p292 = pneg %p61
        %p293 = pneg %p85
        %p294 = pneg %p82
        %p295 = pneg %p106
        %p296 = pneg %p103
        %p297 = pneg %p127
        %p298 = pneg %p124
        %p299 = pneg %p148
        %p300 = pneg %p145
        %p301 = pneg %p169
        %p302 = pneg %p166
        %p303 = pneg %p190
        %p304 = pneg %p187
        %p305 = pneg %p216
        %p306 = pneg %p213
        %s307 = sand.u32 %s203, 1
        %s308 = scalar_lea.sflag [#allocation3], %s307
        %s309 = sand.u32 %s203, 1
        %s310 = smul.addr %s309, 64
        %s311 = scalar_lea.vmem [#allocation2], %s310
        %s312 = smul.u32 8, %s22
        %s313 = ssub.s32 25, %s312
        %p314 = scmp.lt.s32.totalorder %s313, 8
        %s315 = scalar_select %p314, %s313, 8
        %s316 = smul.u32 128, %s315
        %p317 = scmp.lt.s32.totalorder %s312, 24
        %s318 = scalar_select %p317, %s312, 24
        %s319 = smul.addr %s318, 8
        %s320 = scalar_lea.vmem %s0, %s319
        %s321 = smul.u32 8, %s22
        %s322 = ssub.s32 25, %s321
        %p323 = scmp.lt.s32.totalorder %s322, 8
        %s324 = scalar_select %p323, %s322, 8
        %s325 = smul.u32 128, %s324
        %s326 = smul.u32 8, %s22
        %s327 = ssub.s32 25, %s326
        %p328 = scmp.lt.s32.totalorder %s327, 8
        %s329 = scalar_select %p328, %s327, 8
        %s330 = smul.u32 128, %s329
        %v332 = vld [vmem:[%s320] sm:$0xff]
        %v333 = vld [vmem:[%s320 + $0x8] sm:$0xff]
        %v334 = vld [vmem:[%s320 + $0x10] sm:$0xff]
        %v335 = vld [vmem:[%s320 + $0x18] sm:$0xff]
        %v336 = vld [vmem:[%s320 + $0x20] sm:$0xff]
        %v337 = vld [vmem:[%s320 + $0x28] sm:$0xff]
        %v338 = vld [vmem:[%s320 + $0x30] sm:$0xff]
        %v339 = vld [vmem:[%s320 + $0x38] sm:$0xff]
        %v340 = vpack.c.bf16 %v333, %v332
        %v341 = vpack.c.bf16 %v335, %v334
        %v342 = vpack.c.bf16 %v337, %v336
        %v343 = vpack.c.bf16 %v339, %v338
        %v344 = vld [vmem:[%s1] sm:$0xf]
        %v345 = vld [vmem:[%s1 + $0x4] sm:$0xf]
        %v346 = vld [vmem:[%s2] sm:$0x1]
        %v348 = vlaneseq
        %v349 = vshrl.u32 %v348, 7
        %v350 = vsub.s32 0, %v349
        %v351 = vrot.slane %v346, %v350
        %v355 = vunpack.c.l.b16 %v344
        %v356 = vunpack.c.l.b16 %v345
        %v357 = vpack.c.b16 %v356, %v355
        %vm359 = vcmask 130048
        %v361 = vsel %vm359, %v340, 0
        %v364 = vsel %vm359, %v341, 0
        %v367 = vsel %vm359, %v342, 0
        %v370 = vsel %vm359, %v343, 0
        %372 = vmatprep.subr.bf16.mxu0 0
        %373 = vmatpush1.bf16.msra.mxu0 %v357
        %374 = vmatprep.subr.bf16.mxu0 0
        %375 = vmatpush1.bf16.msra.mxu0 0
        %376 = vmatprep.subr.bf16.mxu0 0
        %377 = vmatpush1.bf16.msra.mxu0 0
        %378 = vmatprep.subr.bf16.mxu0 0
        %379 = vmatpush1.bf16.msra.mxu0 0
        %380 = vmatprep.subr.bf16.mxu0 0
        %381 = vmatpush1.bf16.msra.mxu0 0
        %382 = vmatprep.subr.bf16.mxu0 0
        %383 = vmatpush1.bf16.msra.mxu0 0
        %384 = vmatprep.subr.bf16.mxu0 0
        %385 = vmatpush1.bf16.msra.mxu0 0
        %386 = vmatprep.subr.bf16.mxu0 0
        %387 = vmatpush1.bf16.msra.mxu0 0
        %388 = vmatprep.subr.bf16.mxu0 0
        %389 = vmatpush1.bf16.msra.mxu0 0
        %390 = vmatprep.subr.bf16.mxu0 0
        %391 = vmatpush1.bf16.msra.mxu0 0
        %392 = vmatprep.subr.bf16.mxu0 0
        %393 = vmatpush1.bf16.msra.mxu0 0
        %394 = vmatprep.subr.bf16.mxu0 0
        %395 = vmatpush1.bf16.msra.mxu0 0
        %396 = vmatprep.subr.bf16.mxu0 0
        %397 = vmatpush1.bf16.msra.mxu0 0
        %398 = vmatprep.subr.bf16.mxu0 0
        %399 = vmatpush1.bf16.msra.mxu0 0
        %400 = vmatprep.subr.bf16.mxu0 0
        %401 = vmatpush1.bf16.msra.mxu0 0
        %402 = vmatprep.subr.bf16.mxu0 0
        %403 = vmatpush1.bf16.msra.mxu0 0
        %404 = vmatprep.mubr.bf16.mxu0 0
        %405 = vmatmul.mubr.bf16.gmra.mrb[0].mxu0 %v361
        %v406 = vpop.f32.mrb[0].mxu0
        %v407 = vadd.f32 %v351, %v406
        %v408 = vpop.f32.mrb[0].mxu0
        %v409 = vpop.f32.mrb[0].mxu0
        %v410 = vadd.f32 %v351, %v409
        %v411 = vpop.f32.mrb[0].mxu0
        %412 = vmatprep.mubr.bf16.mxu0 0
        %413 = vmatmul.mubr.bf16.gmra.mrb[0].mxu0 %v364
        %v414 = vpop.f32.mrb[0].mxu0
        %v415 = vadd.f32 %v351, %v414
        %v416 = vpop.f32.mrb[0].mxu0
        %v417 = vpop.f32.mrb[0].mxu0
        %v418 = vadd.f32 %v351, %v417
        %v419 = vpop.f32.mrb[0].mxu0
        %420 = vmatprep.mubr.bf16.mxu0 0
        %421 = vmatmul.mubr.bf16.gmra.mrb[0].mxu0 %v367
        %v422 = vpop.f32.mrb[0].mxu0
        %v423 = vadd.f32 %v351, %v422
        %v424 = vpop.f32.mrb[0].mxu0
        %v425 = vpop.f32.mrb[0].mxu0
        %v426 = vadd.f32 %v351, %v425
        %v427 = vpop.f32.mrb[0].mxu0
        %428 = vmatprep.mubr.bf16.mxu0 0
        %429 = vmatmul.mubr.bf16.gmra.mrb[0].mxu0 %v370
        %v430 = vpop.f32.mrb[0].mxu0
        %v431 = vadd.f32 %v351, %v430
        %v432 = vpop.f32.mrb[0].mxu0
        %v433 = vpop.f32.mrb[0].mxu0
        %v434 = vadd.f32 %v351, %v433
        %v435 = vpop.f32.mrb[0].mxu0
        %436 = vdwg.mxu0
        %v437 = vmax.f32 %v407, 0.0
        %v438 = vmax.f32 %v410, 0.0
        %v439 = vmax.f32 %v415, 0.0
        %v440 = vmax.f32 %v418, 0.0
        %v441 = vmax.f32 %v423, 0.0
        %v442 = vmax.f32 %v426, 0.0
        %v443 = vmax.f32 %v431, 0.0
        %v444 = vmax.f32 %v434, 0.0
        %v445 = vpack.c.bf16 %v438, %v437
        %v446 = vpack.c.bf16 %v440, %v439
        %v447 = vpack.c.bf16 %v442, %v441
        %v448 = vpack.c.bf16 %v444, %v443
        %v449 = vld [vmem:[%s3] sm:$0xf]
        %v450 = vld [vmem:[%s3 + $0x4] sm:$0xf]
        %v451 = vld [vmem:[%s3 + $0x8] sm:$0xf]
        %v452 = vld [vmem:[%s3 + $0xc] sm:$0xf]
        %v453 = vld [vmem:[%s3 + $0x10] sm:$0xf]
        %v454 = vld [vmem:[%s3 + $0x14] sm:$0xf]
        %v455 = vld [vmem:[%s3 + $0x18] sm:$0xf]
        %v456 = vld [vmem:[%s3 + $0x1c] sm:$0xf]
        %v457 = vld [vmem:[%s3 + $0x20] sm:$0xf]
        %v458 = vld [vmem:[%s3 + $0x24] sm:$0xf]
        %v459 = vld [vmem:[%s3 + $0x28] sm:$0xf]
        %v460 = vld [vmem:[%s3 + $0x2c] sm:$0xf]
        %v461 = vld [vmem:[%s3 + $0x30] sm:$0xf]
        %v462 = vld [vmem:[%s3 + $0x34] sm:$0xf]
        %v463 = vld [vmem:[%s3 + $0x38] sm:$0xf]
        %v464 = vld [vmem:[%s3 + $0x3c] sm:$0xf]
        %v465 = vld [vmem:[%s4] sm:$0x1]
        %v467 = vlaneseq
        %v468 = vshrl.u32 %v467, 7
        %v469 = vsub.s32 0, %v468
        %v470 = vrot.slane %v465, %v469
        %v488 = vunpack.c.l.b16 %v449
        %v489 = vunpack.c.l.b16 %v450
        %v490 = vunpack.c.l.b16 %v451
        %v491 = vunpack.c.l.b16 %v452
        %v492 = vunpack.c.l.b16 %v453
        %v493 = vunpack.c.l.b16 %v454
        %v494 = vunpack.c.l.b16 %v455
        %v495 = vunpack.c.l.b16 %v456
        %v496 = vunpack.c.l.b16 %v457
        %v497 = vunpack.c.l.b16 %v458
        %v498 = vunpack.c.l.b16 %v459
        %v499 = vunpack.c.l.b16 %v460
        %v500 = vunpack.c.l.b16 %v461
        %v501 = vunpack.c.l.b16 %v462
        %v502 = vunpack.c.l.b16 %v463
        %v503 = vunpack.c.l.b16 %v464
        %v504 = vpack.c.b16 %v489, %v488
        %v505 = vpack.c.b16 %v491, %v490
        %v506 = vpack.c.b16 %v493, %v492
        %v507 = vpack.c.b16 %v495, %v494
        %v508 = vpack.c.b16 %v497, %v496
        %v509 = vpack.c.b16 %v499, %v498
        %v510 = vpack.c.b16 %v501, %v500
        %v511 = vpack.c.b16 %v503, %v502
        %520 = vmatprep.subr.bf16.mxu0 0
        %521 = vmatpush1.bf16.msra.mxu0 %v504
        %522 = vmatprep.subr.bf16.mxu0 0
        %523 = vmatpush1.bf16.msra.mxu0 %v505
        %524 = vmatprep.subr.bf16.mxu0 0
        %525 = vmatpush1.bf16.msra.mxu0 %v506
        %526 = vmatprep.subr.bf16.mxu0 0
        %527 = vmatpush1.bf16.msra.mxu0 %v507
        %528 = vmatprep.subr.bf16.mxu0 0
        %529 = vmatpush1.bf16.msra.mxu0 %v508
        %530 = vmatprep.subr.bf16.mxu0 0
        %531 = vmatpush1.bf16.msra.mxu0 %v509
        %532 = vmatprep.subr.bf16.mxu0 0
        %533 = vmatpush1.bf16.msra.mxu0 %v510
        %534 = vmatprep.subr.bf16.mxu0 0
        %535 = vmatpush1.bf16.msra.mxu0 %v511
        %536 = vmatprep.subr.bf16.mxu0 0
        %537 = vmatpush1.bf16.msra.mxu0 0
        %538 = vmatprep.subr.bf16.mxu0 0
        %539 = vmatpush1.bf16.msra.mxu0 0
        %540 = vmatprep.subr.bf16.mxu0 0
        %541 = vmatpush1.bf16.msra.mxu0 0
        %542 = vmatprep.subr.bf16.mxu0 0
        %543 = vmatpush1.bf16.msra.mxu0 0
        %544 = vmatprep.subr.bf16.mxu0 0
        %545 = vmatpush1.bf16.msra.mxu0 0
        %546 = vmatprep.subr.bf16.mxu0 0
        %547 = vmatpush1.bf16.msra.mxu0 0
        %548 = vmatprep.subr.bf16.mxu0 0
        %549 = vmatpush1.bf16.msra.mxu0 0
        %550 = vmatprep.subr.bf16.mxu0 0
        %551 = vmatpush1.bf16.msra.mxu0 0
        %552 = vmatprep.mubr.bf16.mxu0 0
        %553 = vmatmul.mubr.bf16.gmra.mrb[0].mxu0 %v445
        %v554 = vpop.f32.mrb[0].mxu0
        %v555 = vadd.f32 %v470, %v554
        %v556 = vpop.f32.mrb[0].mxu0
        %v557 = vpop.f32.mrb[0].mxu0
        %v558 = vadd.f32 %v470, %v557
        %v559 = vpop.f32.mrb[0].mxu0
        %560 = vmatprep.mubr.bf16.mxu0 0
        %561 = vmatmul.mubr.bf16.gmra.mrb[0].mxu0 %v446
        %v562 = vpop.f32.mrb[0].mxu0
        %v563 = vadd.f32 %v470, %v562
        %v564 = vpop.f32.mrb[0].mxu0
        %v565 = vpop.f32.mrb[0].mxu0
        %v566 = vadd.f32 %v470, %v565
        %v567 = vpop.f32.mrb[0].mxu0
        %568 = vmatprep.mubr.bf16.mxu0 0
        %569 = vmatmul.mubr.bf16.gmra.mrb[0].mxu0 %v447
        %v570 = vpop.f32.mrb[0].mxu0
        %v571 = vadd.f32 %v470, %v570
        %v572 = vpop.f32.mrb[0].mxu0
        %v573 = vpop.f32.mrb[0].mxu0
        %v574 = vadd.f32 %v470, %v573
        %v575 = vpop.f32.mrb[0].mxu0
        %576 = vmatprep.mubr.bf16.mxu0 0
        %577 = vmatmul.mubr.bf16.gmra.mrb[0].mxu0 %v448
        %v578 = vpop.f32.mrb[0].mxu0
        %v579 = vadd.f32 %v470, %v578
        %v580 = vpop.f32.mrb[0].mxu0
        %v581 = vpop.f32.mrb[0].mxu0
        %v582 = vadd.f32 %v470, %v581
        %v583 = vpop.f32.mrb[0].mxu0
        %584 = vdwg.mxu0
        %v585 = vmax.f32 %v555, 0.0
        %v586 = vmax.f32 %v558, 0.0
        %v587 = vmax.f32 %v563, 0.0
        %v588 = vmax.f32 %v566, 0.0
        %v589 = vmax.f32 %v571, 0.0
        %v590 = vmax.f32 %v574, 0.0
        %v591 = vmax.f32 %v579, 0.0
        %v592 = vmax.f32 %v582, 0.0
        %v593 = vpack.c.bf16 %v586, %v585
        %v594 = vpack.c.bf16 %v588, %v587
        %v595 = vpack.c.bf16 %v590, %v589
        %v596 = vpack.c.bf16 %v592, %v591
        %v597 = vld [vmem:[%s5] sm:$0xf]
        %v598 = vld [vmem:[%s5 + $0x4] sm:$0xf]
        %v599 = vld [vmem:[%s5 + $0x8] sm:$0xf]
        %v600 = vld [vmem:[%s5 + $0xc] sm:$0xf]
        %v601 = vld [vmem:[%s5 + $0x10] sm:$0xf]
        %v602 = vld [vmem:[%s5 + $0x14] sm:$0xf]
        %v603 = vld [vmem:[%s5 + $0x18] sm:$0xf]
        %v604 = vld [vmem:[%s5 + $0x1c] sm:$0xf]
        %v605 = vld [vmem:[%s5 + $0x20] sm:$0xf]
        %v606 = vld [vmem:[%s5 + $0x24] sm:$0xf]
        %v607 = vld [vmem:[%s5 + $0x28] sm:$0xf]
        %v608 = vld [vmem:[%s5 + $0x2c] sm:$0xf]
        %v609 = vld [vmem:[%s5 + $0x30] sm:$0xf]
        %v610 = vld [vmem:[%s5 + $0x34] sm:$0xf]
        %v611 = vld [vmem:[%s5 + $0x38] sm:$0xf]
        %v612 = vld [vmem:[%s5 + $0x3c] sm:$0xf]
        %v613 = vld [vmem:[%s6] sm:$0xf]
        %v614 = vld [vmem:[%s6 + $0x4] sm:$0xf]
        %v615 = vld [vmem:[%s6 + $0x8] sm:$0xf]
        %v616 = vld [vmem:[%s6 + $0xc] sm:$0xf]
        %v617 = vld [vmem:[%s6 + $0x10] sm:$0xf]
        %v618 = vld [vmem:[%s6 + $0x14] sm:$0xf]
        %v619 = vld [vmem:[%s6 + $0x18] sm:$0xf]
        %v620 = vld [vmem:[%s6 + $0x1c] sm:$0xf]
        %v621 = vld [vmem:[%s6 + $0x20] sm:$0xf]
        %v622 = vld [vmem:[%s6 + $0x24] sm:$0xf]
        %v623 = vld [vmem:[%s6 + $0x28] sm:$0xf]
        %v624 = vld [vmem:[%s6 + $0x2c] sm:$0xf]
        %v625 = vld [vmem:[%s6 + $0x30] sm:$0xf]
        %v626 = vld [vmem:[%s6 + $0x34] sm:$0xf]
        %v627 = vld [vmem:[%s6 + $0x38] sm:$0xf]
        %v628 = vld [vmem:[%s6 + $0x3c] sm:$0xf]
        %v645 = vunpack.c.l.b16 %v613
        %v646 = vunpack.c.l.b16 %v614
        %v647 = vunpack.c.l.b16 %v615
        %v648 = vunpack.c.l.b16 %v616
        %v649 = vunpack.c.l.b16 %v617
        %v650 = vunpack.c.l.b16 %v618
        %v651 = vunpack.c.l.b16 %v619
        %v652 = vunpack.c.l.b16 %v620
        %v653 = vunpack.c.l.b16 %v621
        %v654 = vunpack.c.l.b16 %v622
        %v655 = vunpack.c.l.b16 %v623
        %v656 = vunpack.c.l.b16 %v624
        %v657 = vunpack.c.l.b16 %v625
        %v658 = vunpack.c.l.b16 %v626
        %v659 = vunpack.c.l.b16 %v627
        %v660 = vunpack.c.l.b16 %v628
        %v661 = vpack.c.b16 %v646, %v645
        %v662 = vpack.c.b16 %v648, %v647
        %v663 = vpack.c.b16 %v650, %v649
        %v664 = vpack.c.b16 %v652, %v651
        %v665 = vpack.c.b16 %v654, %v653
        %v666 = vpack.c.b16 %v656, %v655
        %v667 = vpack.c.b16 %v658, %v657
        %v668 = vpack.c.b16 %v660, %v659
        %677 = vmatprep.subr.bf16.mxu0 0
        %678 = vmatpush1.bf16.msra.mxu0 %v661
        %679 = vmatprep.subr.bf16.mxu0 0
        %680 = vmatpush1.bf16.msra.mxu0 %v662
        %681 = vmatprep.subr.bf16.mxu0 0
        %682 = vmatpush1.bf16.msra.mxu0 %v663
        %683 = vmatprep.subr.bf16.mxu0 0
        %684 = vmatpush1.bf16.msra.mxu0 %v664
        %685 = vmatprep.subr.bf16.mxu0 0
        %686 = vmatpush1.bf16.msra.mxu0 %v665
        %687 = vmatprep.subr.bf16.mxu0 0
        %688 = vmatpush1.bf16.msra.mxu0 %v666
        %689 = vmatprep.subr.bf16.mxu0 0
        %690 = vmatpush1.bf16.msra.mxu0 %v667
        %691 = vmatprep.subr.bf16.mxu0 0
        %692 = vmatpush1.bf16.msra.mxu0 %v668
        %693 = vmatprep.subr.bf16.mxu0 0
        %694 = vmatpush1.bf16.msra.mxu0 0
        %695 = vmatprep.subr.bf16.mxu0 0
        %696 = vmatpush1.bf16.msra.mxu0 0
        %697 = vmatprep.subr.bf16.mxu0 0
        %698 = vmatpush1.bf16.msra.mxu0 0
        %699 = vmatprep.subr.bf16.mxu0 0
        %700 = vmatpush1.bf16.msra.mxu0 0
        %701 = vmatprep.subr.bf16.mxu0 0
        %702 = vmatpush1.bf16.msra.mxu0 0
        %703 = vmatprep.subr.bf16.mxu0 0
        %704 = vmatpush1.bf16.msra.mxu0 0
        %705 = vmatprep.subr.bf16.mxu0 0
        %706 = vmatpush1.bf16.msra.mxu0 0
        %707 = vmatprep.subr.bf16.mxu0 0
        %708 = vmatpush1.bf16.msra.mxu0 0
        %709 = vmatprep.mubr.bf16.mxu0 0
        %710 = vmatmul.mubr.bf16.gmra.mrb[0].mxu0 %v593
        %v711 = vpop.f32.mrb[0].mxu0
        %v712 = vadd.f32 0.0, %v711
        %v713 = vpop.f32.mrb[0].mxu0
        %v714 = vpop.f32.mrb[0].mxu0
        %v715 = vadd.f32 0.0, %v714
        %v716 = vpop.f32.mrb[0].mxu0
        %717 = vmatprep.mubr.bf16.mxu0 0
        %718 = vmatmul.mubr.bf16.gmra.mrb[0].mxu0 %v594
        %v719 = vpop.f32.mrb[0].mxu0
        %v720 = vadd.f32 0.0, %v719
        %v721 = vpop.f32.mrb[0].mxu0
        %v722 = vpop.f32.mrb[0].mxu0
        %v723 = vadd.f32 0.0, %v722
        %v724 = vpop.f32.mrb[0].mxu0
        %725 = vmatprep.mubr.bf16.mxu0 0
        %726 = vmatmul.mubr.bf16.gmra.mrb[0].mxu0 %v595
        %v727 = vpop.f32.mrb[0].mxu0
        %v728 = vadd.f32 0.0, %v727
        %v729 = vpop.f32.mrb[0].mxu0
        %v730 = vpop.f32.mrb[0].mxu0
        %v731 = vadd.f32 0.0, %v730
        %v732 = vpop.f32.mrb[0].mxu0
        %733 = vmatprep.mubr.bf16.mxu0 0
        %734 = vmatmul.mubr.bf16.gmra.mrb[0].mxu0 %v596
        %v735 = vpop.f32.mrb[0].mxu0
        %v736 = vadd.f32 0.0, %v735
        %v737 = vpop.f32.mrb[0].mxu0
        %v738 = vpop.f32.mrb[0].mxu0
        %v739 = vadd.f32 0.0, %v738
        %v740 = vpop.f32.mrb[0].mxu0
        %741 = vdwg.mxu0
        %v758 = vunpack.c.l.b16 %v597
        %v759 = vunpack.c.l.b16 %v598
        %v760 = vunpack.c.l.b16 %v599
        %v761 = vunpack.c.l.b16 %v600
        %v762 = vunpack.c.l.b16 %v601
        %v763 = vunpack.c.l.b16 %v602
        %v764 = vunpack.c.l.b16 %v603
        %v765 = vunpack.c.l.b16 %v604
        %v766 = vunpack.c.l.b16 %v605
        %v767 = vunpack.c.l.b16 %v606
        %v768 = vunpack.c.l.b16 %v607
        %v769 = vunpack.c.l.b16 %v608
        %v770 = vunpack.c.l.b16 %v609
        %v771 = vunpack.c.l.b16 %v610
        %v772 = vunpack.c.l.b16 %v611
        %v773 = vunpack.c.l.b16 %v612
        %v774 = vpack.c.b16 %v759, %v758
        %v775 = vpack.c.b16 %v761, %v760
        %v776 = vpack.c.b16 %v763, %v762
        %v777 = vpack.c.b16 %v765, %v764
        %v778 = vpack.c.b16 %v767, %v766
        %v779 = vpack.c.b16 %v769, %v768
        %v780 = vpack.c.b16 %v771, %v770
        %v781 = vpack.c.b16 %v773, %v772
        %790 = vmatprep.subr.bf16.mxu0 0
        %791 = vmatpush1.bf16.msra.mxu0 %v774
        %792 = vmatprep.subr.bf16.mxu0 0
        %793 = vmatpush1.bf16.msra.mxu0 %v775
        %794 = vmatprep.subr.bf16.mxu0 0
        %795 = vmatpush1.bf16.msra.mxu0 %v776
        %796 = vmatprep.subr.bf16.mxu0 0
        %797 = vmatpush1.bf16.msra.mxu0 %v777
        %798 = vmatprep.subr.bf16.mxu0 0
        %799 = vmatpush1.bf16.msra.mxu0 %v778
        %800 = vmatprep.subr.bf16.mxu0 0
        %801 = vmatpush1.bf16.msra.mxu0 %v779
        %802 = vmatprep.subr.bf16.mxu0 0
        %803 = vmatpush1.bf16.msra.mxu0 %v780
        %804 = vmatprep.subr.bf16.mxu0 0
        %805 = vmatpush1.bf16.msra.mxu0 %v781
        %806 = vmatprep.subr.bf16.mxu0 0
        %807 = vmatpush1.bf16.msra.mxu0 0
        %808 = vmatprep.subr.bf16.mxu0 0
        %809 = vmatpush1.bf16.msra.mxu0 0
        %810 = vmatprep.subr.bf16.mxu0 0
        %811 = vmatpush1.bf16.msra.mxu0 0
        %812 = vmatprep.subr.bf16.mxu0 0
        %813 = vmatpush1.bf16.msra.mxu0 0
        %814 = vmatprep.subr.bf16.mxu0 0
        %815 = vmatpush1.bf16.msra.mxu0 0
        %816 = vmatprep.subr.bf16.mxu0 0
        %817 = vmatpush1.bf16.msra.mxu0 0
        %818 = vmatprep.subr.bf16.mxu0 0
        %819 = vmatpush1.bf16.msra.mxu0 0
        %820 = vmatprep.subr.bf16.mxu0 0
        %821 = vmatpush1.bf16.msra.mxu0 0
        %822 = vmatprep.mubr.bf16.mxu0 0
        %823 = vmatmul.mubr.bf16.gmra.mrb[0].mxu0 %v445
        %v824 = vpop.f32.mrb[0].mxu0
        %v825 = vadd.f32 %v712, %v824
        %v826 = vpop.f32.mrb[0].mxu0
        %v827 = vpop.f32.mrb[0].mxu0
        %v828 = vadd.f32 %v715, %v827
        %v829 = vpop.f32.mrb[0].mxu0
        %830 = vmatprep.mubr.bf16.mxu0 0
        %831 = vmatmul.mubr.bf16.gmra.mrb[0].mxu0 %v446
        %v832 = vpop.f32.mrb[0].mxu0
        %v833 = vadd.f32 %v720, %v832
        %v834 = vpop.f32.mrb[0].mxu0
        %v835 = vpop.f32.mrb[0].mxu0
        %v836 = vadd.f32 %v723, %v835
        %v837 = vpop.f32.mrb[0].mxu0
        %838 = vmatprep.mubr.bf16.mxu0 0
        %839 = vmatmul.mubr.bf16.gmra.mrb[0].mxu0 %v447
        %v840 = vpop.f32.mrb[0].mxu0
        %v841 = vadd.f32 %v728, %v840
        %v842 = vpop.f32.mrb[0].mxu0
        %v843 = vpop.f32.mrb[0].mxu0
        %v844 = vadd.f32 %v731, %v843
        %v845 = vpop.f32.mrb[0].mxu0
        %846 = vmatprep.mubr.bf16.mxu0 0
        %847 = vmatmul.mubr.bf16.gmra.mrb[0].mxu0 %v448
        %v848 = vpop.f32.mrb[0].mxu0
        %v849 = vadd.f32 %v736, %v848
        %v850 = vpop.f32.mrb[0].mxu0
        %v851 = vpop.f32.mrb[0].mxu0
        %v852 = vadd.f32 %v739, %v851
        %v853 = vpop.f32.mrb[0].mxu0
        %854 = vdwg.mxu0
        %v855 = vld [vmem:[%s7] sm:$0x1]
        %v857 = vlaneseq
        %v858 = vshrl.u32 %v857, 7
        %v859 = vsub.s32 0, %v858
        %v860 = vrot.slane %v855, %v859
        %v862 = vadd.f32 %v825, %v860
        %v863 = vadd.f32 %v828, %v860
        %v864 = vadd.f32 %v833, %v860
        %v865 = vadd.f32 %v836, %v860
        %v866 = vadd.f32 %v841, %v860
        %v867 = vadd.f32 %v844, %v860
        %v868 = vadd.f32 %v849, %v860
        %v869 = vadd.f32 %v852, %v860
        %870 = vst [vmem:[%s311] sm:$0xff] %v862
        %871 = vst [vmem:[%s311 + $0x8] sm:$0xff] %v863
        %872 = vst [vmem:[%s311 + $0x10] sm:$0xff] %v864
        %873 = vst [vmem:[%s311 + $0x18] sm:$0xff] %v865
        %874 = vst [vmem:[%s311 + $0x20] sm:$0xff] %v866
        %875 = vst [vmem:[%s311 + $0x28] sm:$0xff] %v867
        %876 = vst [vmem:[%s311 + $0x30] sm:$0xff] %v868
        %877 = vst [vmem:[%s311 + $0x38] sm:$0xff] %v869
        %s878 = sand.u32 %s203, 1
        %s879 = scalar_lea.sflag [#allocation3], %s878
        %s880 = sand.u32 %s203, 1
        %s881 = smul.addr %s880, 64
        %s882 = scalar_lea.vmem [#allocation2], %s881
        // Predicated region
        $region53: #{tpu_custom_call.1} parent=51 // pred_check
          %p883 = pneg %p213
        $region54: #{tpu_custom_call.1} parent=51 // pred_check_branch
          %885 = sbr.rel (%p883) target = $region56
        $region55: #{tpu_custom_call.1} parent=51 // pred_region
          %s886 = smul.u32 8, %s22
          %s887 = ssub.s32 25, %s886
          %p888 = scmp.lt.s32.totalorder %s887, 8
          %s889 = scalar_select %p888, %s887, 8
          %s890 = smul.u32 128, %s889
          %s892 = ssub.s32 1024, %s890
          %893 = vsyncadd %s879, %s892
          %p894 = scmp.ne.s32.totalorder 0, %s890
          %s895 = smul.addr %s886, 128
          %s896 = scalar_lea.hbm %s8, %s895
          %s897 = smul.u32 8, %s889
          %s898 = sshll.u32 %s882, 4
          %s899 = int_to_ptr.vmem [resolvable:$true] %s898
          %s900 = sshll.u32 %s897, 4
          %904 = dma.vmem_to_hbm [thread:$0]  (%p894), %s899, %s900, %s896, %s879, 128, 128, 8
        $region56: #{tpu_custom_call.1} parent=51 // pred_fallthru
          _
      $region52: #{tpu_custom_call.1} parent=5 // pred_fallthru
        _
      %p905 = scmp.le.s32.totalorder 2, %s17
      // Predicated region
      $region57: #{tpu_custom_call.1} parent=5 // pred_check
        %p906 = pneg %p905
      $region58: #{tpu_custom_call.1} parent=5 // pred_check_branch
        %908 = sbr.rel (%p906) target = $region60
      $region59: #{tpu_custom_call.1} parent=5 // pred_region
        %s909 = ssub.s32 %s17, 2
        // Predicated region
        $region61: #{tpu_custom_call.1} parent=59 // pred_check
          %p910 = pneg %p219
        $region62: #{tpu_custom_call.1} parent=59 // pred_check_branch
          %912 = sbr.rel (%p910) target = $region64
        $region63: #{tpu_custom_call.1} parent=59 // pred_region
          %s913 = sand.u32 %s204, 1
          %s914 = scalar_lea.sflag [#allocation3], %s913
          %s915 = sand.u32 %s204, 1
          %s916 = smul.addr %s915, 64
          %s917 = scalar_lea.vmem [#allocation2], %s916
          %918 = dma.done %s914, 1024
        $region64: #{tpu_custom_call.1} parent=59 // pred_fallthru
          _
      $region60: #{tpu_custom_call.1} parent=5 // pred_fallthru
        _
    $region6: #{tpu_custom_call.1} parent=1 // loop_footer
      %s21 = sadd.s32 1, %s17
    $region7: #{tpu_custom_call.1} parent=1 // loop_footer_branch
      %16 = sbr.rel target = $region3
    $region8: #{tpu_custom_call.1} parent=1 // loop_exit
      _
    %919 = vsyncpa [#allocation3], 1
    %s920 = scalar_lea.sflag [#allocation3], 1
    %921 = vsyncpa %s920, 1

</llo_original>
